<compile_context>
chip_gen: v7x
topology: tpu7x:2x2x1
jax: 0.10.0
libtpu: 0.0.40
codegen_flags: <defaults>
</compile_context>

<pallas_src>
import jax
import jax.numpy as jnp
from jax.experimental import pallas as pl
from jax.experimental.pallas import tpu as pltpu


def _round_up(x, m):
    return (x + m - 1) // m * m


def _compiler_params(semantics, est_bytes):
    """Scoped-VMEM limit from a working-set estimate (32 MiB floor)."""
    limit = 32 * 1024 * 1024
    need = int(est_bytes * 1.25)
    if need > limit:
        # TODO(synk): cap nearer 48 MiB on v7x (64 MiB physical VMEM).
        limit = min(_round_up(need, 1 << 20), 96 * 1024 * 1024)
    return pltpu.CompilerParams(dimension_semantics=semantics,
                                vmem_limit_bytes=limit)


# ---------------------------------------------------------------------------
# 1. Fused preprocess + embedding matmul (tiled, bf16 MXU, pipelined)
# ---------------------------------------------------------------------------

def _embed_matmul_kernel(x_ref, w_ref, b_ref, o_ref, acc_ref):
    k = pl.program_id(2)

    @pl.when(k == 0)
    def _():
        acc_ref[...] = jnp.zeros_like(acc_ref)

    # x stays f32 in HBM; cast to bf16 on the VPU (hidden under the MXU)
    acc_ref[...] += jnp.dot(x_ref[...].astype(jnp.bfloat16), w_ref[...],
                            preferred_element_type=jnp.float32)

    @pl.when(k == pl.num_programs(2) - 1)
    def _():
        o_ref[...] = acc_ref[...] + b_ref[...]


def pallas_embed(x_flat, w_eff, bias):
    """x_flat: (M, K) f32 raw [0,1] values (BTCHW-flat per row).
    w_eff: (K, Dp) bf16 with affine + permutation folded in.
    bias:  (1, Dp) f32.   Returns (M, Dp) f32 embeddings."""
    M, K = x_flat.shape
    K2, Dp = w_eff.shape
    assert K == K2 and Dp % 128 == 0

    # Row tile: large enough to amortize W re-streams (W is re-read per i).
    tm = 256 if M >= 256 else _round_up(max(M, 1), 8)
    # Column tile: single pass over x whenever the feature dim is modest.
    if Dp <= 1024:
        tn = Dp
    elif Dp % 512 == 0:
        tn = 512
    elif Dp % 256 == 0:
        tn = 256
    else:
        tn = 128
    # Contraction tile: big to cut per-step overhead / DMA descriptor count.
    if K >= 2048:
        tk = 2048
    elif K >= 1024:
        tk = 1024
    else:
        tk = _round_up(K, 128)

    Mp = _round_up(M, tm)
    Kp = _round_up(K, tk)
    x = x_flat
    if (Mp, Kp) != (M, K):     # typical video K (C*Tc*H*W) is 128-divisible
        x = jnp.pad(x, ((0, Mp - M), (0, Kp - K)))
    w_p = w_eff if Kp == K else jnp.pad(w_eff, ((0, Kp - K), (0, 0)))

    est = (2 * tm * tk * 4      # x tiles (f32, double buffered)
           + 2 * tk * tn * 2    # w tiles (bf16)
           + 2 * tm * tn * 4    # out tiles
           + tm * tn * 4        # accumulator
           + 2 * tn * 4)        # bias
    out = pl.pallas_call(
        _embed_matmul_kernel,
        out_shape=jax.ShapeDtypeStruct((Mp, Dp), jnp.float32),
        grid=(Mp // tm, Dp // tn, Kp // tk),
        in_specs=[pl.BlockSpec((tm, tk), lambda i, j, k: (i, k)),
                  pl.BlockSpec((tk, tn), lambda i, j, k: (k, j)),
                  pl.BlockSpec((1, tn), lambda i, j, k: (0, j))],
        out_specs=pl.BlockSpec((tm, tn), lambda i, j, k: (i, j)),
        scratch_shapes=[pltpu.VMEM((tm, tn), jnp.float32)],
        compiler_params=_compiler_params(
            ("parallel", "parallel", "arbitrary"), est),
    )(x, w_p, bias)
    return out[:M]


# ---------------------------------------------------------------------------
# 2. Covariance + mean + trace (torch.cov semantics), streamed over N
# ---------------------------------------------------------------------------

def _make_cov_kernel(n_true, denom):
    inv_n = 1.0 / float(n_true)
    inv_denom = 1.0 / float(denom)
    n_f = float(n_true)

    def kernel(x_ref, cov_ref, mu_ref, tr_ref, xsum_ref):
        i = pl.program_id(0)

        @pl.when(i == 0)
        def _():
            cov_ref[...] = jnp.zeros_like(cov_ref)
            tr_ref[...] = jnp.zeros_like(tr_ref)
            xsum_ref[...] = jnp.zeros_like(xsum_ref)

        x = x_ref[...]                               # (tn, Dp) f32
        # Accumulate x^T x directly into the VMEM-resident cov output
        # (constant index_map), no Dp^2 scratch needed.
        cov_ref[...] += jax.lax.dot_general(
            x, x, (((0,), (0,)), ((), ())),
            preferred_element_type=jnp.float32)
        xsum_ref[...] += jnp.sum(x, axis=0, keepdims=True)
        # Streamed trace: tr(cov) = (sum x^2 - n * sum mu^2) / denom
        tr_ref[...] += jnp.reshape(jnp.sum(x * x), (1, 1))

        @pl.when(i == pl.num_programs(0) - 1)
        def _():
            mu = xsum_ref[...] * inv_n               # (1, Dp)
            outer = jax.lax.dot_general(             # mu^T mu -> (Dp, Dp)
                mu, mu, (((0,), (0,)), ((), ())),
                preferred_element_type=jnp.float32)
            # Single-pass (sum xx^T - n mu mu^T)/denom in f32.
            # TODO(synk): two-pass (centered) variant if means grow large.
            cov_ref[...] = (cov_ref[...] - n_f * outer) * inv_denom
            mu_ref[...] = mu
            tr_ref[...] = (tr_ref[...]
                           - n_f * jnp.reshape(jnp.sum(mu * mu), (1, 1))
                           ) * inv_denom

    return kernel


def pallas_cov_and_mean(acts):
    """acts: (N, D) observations-by-features (D on the lane axis).

    Returns (cov (D,D), mu (1,D), trace (1,1)); correction = 1 if N > 1,
    matching torch.cov(input (D,N), correction=unbiased_correction)."""
    N, Dp = acts.shape
    correction = 1 if N > 1 else 0
    denom = max(N - correction, 1)

    # Bigger observation tile: fewer grid steps, longer MXU contraction.
    tn = 512 if N >= 512 else _round_up(max(N, 1), 8)
    Np = _round_up(N, tn)
    if Np != N:
        # zero rows contribute nothing to sum(x), x^T x or sum(x^2)
        acts = jnp.pad(acts, ((0, Np - N), (0, 0)))

    est = (Dp * Dp * 4          # cov output (resident, single buffer)
           + 2 * tn * Dp * 4    # input tiles (double buffered)
           + 4 * Dp * 4 + 64)   # mu + xsum + tr
    # TODO(synk): add a parallel column-tile axis over Dp so v7x's second
    # TensorCore shares the covariance stream.
    cov, mu, tr = pl.pallas_call(
        _make_cov_kernel(N, denom),
        out_shape=(jax.ShapeDtypeStruct((Dp, Dp), jnp.float32),
                   jax.ShapeDtypeStruct((1, Dp), jnp.float32),
                   jax.ShapeDtypeStruct((1, 1), jnp.float32)),
        grid=(Np // tn,),
        in_specs=[pl.BlockSpec((tn, Dp), lambda i: (i, 0))],
        out_specs=(pl.BlockSpec((Dp, Dp), lambda i: (0, 0)),
                   pl.BlockSpec((1, Dp), lambda i: (0, 0)),
                   pl.BlockSpec((1, 1), lambda i: (0, 0))),
        scratch_shapes=[pltpu.VMEM((1, Dp), jnp.float32)],
        compiler_params=_compiler_params(("arbitrary",), est),
    )(acts)
    return cov, mu, tr


# ---------------------------------------------------------------------------
# 3. Triple matmul  S_r^{1/2} @ S_g @ S_r^{1/2}  (output-column tiled)
# ---------------------------------------------------------------------------

def _triple_matmul_kernel(a_ref, b_ref, c_ref, o_ref):
    # o[:, j] = a @ (b @ c[:, j]); a, b stay resident, c/o are column tiles.
    bc = jnp.dot(b_ref[...], c_ref[...], preferred_element_type=jnp.float32)
    o_ref[...] = jnp.dot(a_ref[...], bc, preferred_element_type=jnp.float32)


def pallas_triple_matmul(a, b, c):
    D = a.shape[0]
    if D <= 512:
        tc = D
    elif D % 256 == 0:
        tc = 256
    else:
        tc = 128
    est = (4 * D * D * 4        # a + b (double buffered, constant index)
           + 4 * D * tc * 4     # c tiles + o tiles
           + D * tc * 4)        # intermediate b@c
    return pl.pallas_call(
        _triple_matmul_kernel,
        out_shape=jax.ShapeDtypeStruct((D, D), jnp.float32),
        grid=(D // tc,),
        in_specs=[pl.BlockSpec((D, D), lambda j: (0, 0)),
                  pl.BlockSpec((D, D), lambda j: (0, 0)),
                  pl.BlockSpec((D, tc), lambda j: (0, j))],
        out_specs=pl.BlockSpec((D, tc), lambda j: (0, j)),
        compiler_params=_compiler_params(("parallel",), est),
    )(a, b, c)


# ---------------------------------------------------------------------------
# Glue (mirrors the PyTorch module structure)
# ---------------------------------------------------------------------------

def prepare_embed_weights(w, chunk_shape):
    """Fold fvd_preprocess (2*v - 1 affine, BTCHW->BCTHW permute) into the
    static linear "I3D" weight, and pad the feature dim to a multiple of 128.

    w: (C*Tc*H*W, D) defined over BCTHW-flat rows (I3D convention).
    Returns (w_eff bf16 (Tc*C*H*W, Dp), bias f32 (1, Dp), D)."""
    C, Tc, H, W = chunk_shape
    K, D = w.shape
    assert K == C * Tc * H * W, (K, chunk_shape)
    w_perm = jnp.transpose(w.reshape(C, Tc, H, W, D),
                           (1, 0, 2, 3, 4)).reshape(K, D)
    w_eff = 2.0 * w_perm                              # (2v - 1) @ W
    bias = -jnp.sum(w_perm, axis=0, keepdims=True)    # (1, D)
    Dp = _round_up(D, 128)
    if Dp != D:
        w_eff = jnp.pad(w_eff, ((0, 0), (0, Dp - D)))
        bias = jnp.pad(bias, ((0, 0), (0, Dp - D)))
    return w_eff.astype(jnp.bfloat16), bias.astype(jnp.float32), D


def flatten_videos(videos_list, image_shape, chunk_size,
                   chunk_size_threshold=8):
    """Flatten videos (or their chunks) into BTCHW-flat rows, (M, K)."""
    _, C, H, W = videos_list[0].shape
    assert (H, W) == tuple(image_shape)
    # TODO(synk): bilinear resize kernel when target_resolution != input res.

    if chunk_size > chunk_size_threshold:
        cs = chunk_size
        chunk_list = []
        for v in videos_list:                         # v: (T, C, H, W)
            T = v.shape[0]
            if not T < cs:
                rounded = T // cs * cs                # remainder frames dropped
                chunk_list.append(
                    v[:rounded].reshape(rounded // cs, cs * C * H * W))
        if not chunk_list:
            raise RuntimeError(
                "No video is long enough for chunk_size; embeddings empty.")
        return jnp.concatenate(chunk_list, axis=0)
    videos = jnp.stack(videos_list)                   # (B, T, C, H, W)
    return videos.reshape(videos.shape[0], -1)        # BTCHW-flat


def calculate_fvd(real_acts, gen_acts):
    sigma_real, mu_real, tr_real = pallas_cov_and_mean(real_acts)
    sigma_gen, mu_gen, tr_gen = pallas_cov_and_mean(gen_acts)

    # tr(sqrtm(Sr @ Sg)) = tr(sqrtm(Sr^{1/2} Sg Sr^{1/2})) = sum sqrt(eigvalsh)
    # TODO(synk): eigendecomposition has no Pallas equivalent; plain JAX here.
    evals_r, evecs_r = jnp.linalg.eigh(sigma_real)
    sqrt_r = (evecs_r * jnp.sqrt(jnp.maximum(evals_r, 0.0))[None, :]) @ evecs_r.T
    sqrt_r = sqrt_r.astype(jnp.float32)
    m = pallas_triple_matmul(sqrt_r, sigma_gen, sqrt_r)
    evals_m = jnp.linalg.eigvalsh(0.5 * (m + m.T))
    tr_covmean = jnp.sum(jnp.sqrt(jnp.maximum(evals_m, 0.0)))

    # FID combine is O(Dp) scalar work: plain XLA fuses it with the eigvalsh
    # epilogue (dedicated pallas_call dropped per the performance review).
    diff = mu_real[0] - mu_gen[0]
    return (jnp.sum(diff * diff) + tr_real[0, 0] + tr_gen[0, 0]
            - 2.0 * tr_covmean)


def fvd_forward(real_videos, generated_videos, w, image_shape,
                chunk_size=9, return_embed=False, chunk_size_threshold=8):
    for r, g in zip(real_videos, generated_videos):
        if r.shape != g.shape:
            raise RuntimeError(
                f"The size of the real videos {r.shape} should be the same "
                f"as the generated videos {g.shape}")
    T0, C, H, W = real_videos[0].shape
    cs = chunk_size if chunk_size > chunk_size_threshold else T0
    w_eff, bias, d_feat = prepare_embed_weights(w, (C, cs, H, W))

    x_real = flatten_videos(real_videos, image_shape, chunk_size,
                            chunk_size_threshold)
    x_gen = flatten_videos(generated_videos, image_shape, chunk_size,
                           chunk_size_threshold)
    n_real = x_real.shape[0]
    # Single fused embed call: W streamed once for both sets, one launch,
    # and twice the row extent for megacore sharding.
    x_all = jnp.concatenate([x_real, x_gen], axis=0).astype(jnp.float32)
    emb_all = pallas_embed(x_all, w_eff, bias)
    embed_real = emb_all[:n_real]
    embed_gen = emb_all[n_real:]

    if return_embed:
        # match the reference (D, N) layout with the feature pad removed
        return embed_real[:, :d_feat].T, embed_gen[:, :d_feat].T
    return calculate_fvd(embed_real, embed_gen)


# ---------------------------------------------------------------------------

if __name__ == "__main__":
    B, T, C, H, W = 2, 8, 3, 16, 16
    D_FEAT = 32
    IMAGE_SHAPE = (H, W)

    key = jax.random.PRNGKey(0)
    kr, kg = jax.random.split(key, 2)
    real = jax.random.uniform(kr, (B, T, C, H, W), jnp.float32)
    gen = jax.random.uniform(kg, (B, T, C, H, W), jnp.float32)
    real_list = [real[i] for i in range(B)]
    gen_list = [gen[i] for i in range(B)]

    # Deterministic synthetic "I3D" weights: flattened BCTHW chunk -> feature.
    K = C * T * H * W
    w = 0.02 * jax.random.normal(jax.random.PRNGKey(42), (K, D_FEAT),
                                 jnp.float32)

    # chunk_size=8 (<= threshold) -> stacked-video branch of flatten_videos.
    result = fvd_forward(real_list, gen_list, w, IMAGE_SHAPE, chunk_size=8)
    jax.block_until_ready(result)
    assert jnp.isfinite(result)
    print("KERNEL_OK")
</pallas_src>

<mosaic_0001>
module attributes {stable_mosaic.version = 11 : i64} {
  func.func @_embed_matmul_kernel(%arg0: i32, %arg1: i32, %arg2: i32, %arg3: memref<8x2048xf32, #tpu.memory_space<vmem>>, %arg4: memref<2048x128xbf16, #tpu.memory_space<vmem>>, %arg5: memref<1x128xf32, #tpu.memory_space<vmem>>, %arg6: memref<8x128xf32, #tpu.memory_space<vmem>>, %arg7: memref<8x128xf32, #tpu.memory_space<vmem>>) attributes {dimension_semantics = [#tpu.dimension_semantics<parallel>, #tpu.dimension_semantics<parallel>, #tpu.dimension_semantics<arbitrary>], iteration_bounds = array<i64: 1, 1, 3>, scalar_prefetch = 0 : i64, scratch_operands = 1 : i64, tpu.core_type = #tpu.core_type<tc>, window_params = [{transform_indices = @transform_0, window_bounds = array<i64: 8, 2048>}, {transform_indices = @transform_1, window_bounds = array<i64: 2048, 128>}, {transform_indices = @transform_2, window_bounds = array<i64: 1, 128>}, {transform_indices = @transform_3, window_bounds = array<i64: 8, 128>}]} {
    %c0_i32 = arith.constant 0 : i32
    %0 = arith.cmpi eq, %arg2, %c0_i32 : i32
    %1 = arith.extui %0 : i1 to i32
    %c0_i32_0 = arith.constant 0 : i32
    %2 = arith.cmpi ne, %1, %c0_i32_0 : i32
    scf.if %2 {
      %cst_9 = arith.constant 0.000000e+00 : f32
      %13 = vector.broadcast %cst_9 : f32 to vector<8x128xf32>
      %c0_10 = arith.constant 0 : index
      %c0_11 = arith.constant 0 : index
      %14 = vector.load %arg7[%c0_10, %c0_11] : memref<8x128xf32, #tpu.memory_space<vmem>>, vector<8x128xf32>
      tpu.vector_store %arg7[%c0_10, %c0_11], %13 {strides = array<i32>} : memref<8x128xf32, #tpu.memory_space<vmem>>, vector<8x128xf32>,
    } else {
    }
    %c0 = arith.constant 0 : index
    %c0_1 = arith.constant 0 : index
    %3 = vector.load %arg7[%c0, %c0_1] : memref<8x128xf32, #tpu.memory_space<vmem>>, vector<8x128xf32>
    %c0_2 = arith.constant 0 : index
    %c0_3 = arith.constant 0 : index
    %4 = vector.load %arg3[%c0_2, %c0_3] : memref<8x2048xf32, #tpu.memory_space<vmem>>, vector<8x2048xf32>
    %5 = arith.truncf %4 : vector<8x2048xf32> to vector<8x2048xbf16>
    %c0_4 = arith.constant 0 : index
    %c0_5 = arith.constant 0 : index
    %6 = vector.load %arg4[%c0_4, %c0_5] : memref<2048x128xbf16, #tpu.memory_space<vmem>>, vector<2048x128xbf16>
    %cst = arith.constant dense<0.000000e+00> : vector<8x128xf32>
    %7 = tpu.matmul %5, %6, %cst {dimension_numbers = #tpu.dot_dimension_numbers<[1], [0], [0], [1], [0, 0, 1, 1], [], []>} : vector<8x2048xbf16>, vector<2048x128xbf16>, vector<8x128xf32> -> vector<8x128xf32>
    %8 = arith.addf %3, %7 : vector<8x128xf32>
    %c0_6 = arith.constant 0 : index
    %c0_7 = arith.constant 0 : index
    %9 = vector.load %arg7[%c0_6, %c0_7] : memref<8x128xf32, #tpu.memory_space<vmem>>, vector<8x128xf32>
    tpu.vector_store %arg7[%c0_6, %c0_7], %8 {strides = array<i32>} : memref<8x128xf32, #tpu.memory_space<vmem>>, vector<8x128xf32>,
    %c2_i32 = arith.constant 2 : i32
    %10 = arith.cmpi eq, %arg2, %c2_i32 : i32
    %11 = arith.extui %10 : i1 to i32
    %c0_i32_8 = arith.constant 0 : i32
    %12 = arith.cmpi ne, %11, %c0_i32_8 : i32
    scf.if %12 {
      %c0_9 = arith.constant 0 : index
      %c0_10 = arith.constant 0 : index
      %13 = vector.load %arg7[%c0_9, %c0_10] : memref<8x128xf32, #tpu.memory_space<vmem>>, vector<8x128xf32>
      %c0_11 = arith.constant 0 : index
      %c0_12 = arith.constant 0 : index
      %14 = vector.load %arg5[%c0_11, %c0_12] : memref<1x128xf32, #tpu.memory_space<vmem>>, vector<1x128xf32>
      %15 = vector.broadcast %14 : vector<1x128xf32> to vector<8x128xf32>
      %16 = arith.addf %13, %15 : vector<8x128xf32>
      %c0_13 = arith.constant 0 : index
      %c0_14 = arith.constant 0 : index
      %17 = vector.load %arg6[%c0_13, %c0_14] : memref<8x128xf32, #tpu.memory_space<vmem>>, vector<8x128xf32>
      tpu.vector_store %arg6[%c0_13, %c0_14], %16 {strides = array<i32>} : memref<8x128xf32, #tpu.memory_space<vmem>>, vector<8x128xf32>,
    } else {
    }
    return
  }
  func.func @transform_0(%arg0: i32, %arg1: i32, %arg2: i32) -> (i32, i32) {
    %c0_i32 = arith.constant 0 : i32
    return %arg0, %arg2 : i32, i32
  }
  func.func @transform_1(%arg0: i32, %arg1: i32, %arg2: i32) -> (i32, i32) {
    %c0_i32 = arith.constant 0 : i32
    return %arg2, %arg1 : i32, i32
  }
  func.func @transform_2(%arg0: i32, %arg1: i32, %arg2: i32) -> (i32, i32) {
    %c0_i32 = arith.constant 0 : i32
    %c0_i32_0 = arith.constant 0 : i32
    return %c0_i32, %arg1 : i32, i32
  }
  func.func @transform_3(%arg0: i32, %arg1: i32, %arg2: i32) -> (i32, i32) {
    %c0_i32 = arith.constant 0 : i32
    return %arg0, %arg1 : i32, i32
  }
}

</mosaic_0001>

<llo_original>
// kernel: tpu_custom_call.1
$region0: #{tpu_custom_call.1}
  #allocation0 [shape = 'u32[]', space=smem, size = 0x4, offset = 0x4, fixed_abs, tag = 'smem constant byte address 0x4 - core index']
  #allocation1 [shape = 'u32[144,128]{1,0:T(1,128)}', space=vmem, size = 0x12000, scoped, tag = 'internal scratch']
  #allocation2 [shape = 'f32[8,128]{1,0:T(8,128)}', space=vmem, size = 0x1000, scoped, tag = 'scratch operand']
  %s0 = inlined_call_operand.hbm [shape: f32[8,6144], index: 0, kind: input, shape index: {}]
  %s1 = inlined_call_operand.hbm [shape: bf16[6144,128], index: 1, kind: input, shape index: {}]
  %s2 = inlined_call_operand.hbm [shape: f32[1,128], index: 2, kind: input, shape index: {}]
  %s3 = inlined_call_operand.hbm [shape: f32[8,128], index: 3, kind: output, shape index: {}]
  %s4 = sld [smem:[#allocation0]]
  $region65: #{tpu_custom_call.1} parent=0
    _
  %s6 = ssub.s32 1, %s4
  %s7 = scalar_select 0, %s6, %s4
  $region1: #{tpu_custom_call.1} parent=0
    #allocation3 [shape = 'u8[131072]{0}', space=vmem, size = 0x20000, scoped, tag = 'input window, operand 0']
    #allocation4 [shape = 's32[2]{0}', space=sflag, size = 0x8, scoped, tag = 'scoped memory for tpu_custom_call.1']
    #allocation5 [shape = 's32[2]{0}', space=sflag, size = 0x8, scoped, tag = 'scoped memory for tpu_custom_call.1']
    #allocation6 [shape = 'u8[1048576]{0}', space=vmem, size = 0x100000, scoped, tag = 'input window, operand 1']
    #allocation7 [shape = 's32[2]{0}', space=sflag, size = 0x8, scoped, tag = 'scoped memory for tpu_custom_call.1']
    #allocation8 [shape = 'u8[512]{0}', space=vmem, size = 0x400, scoped, tag = 'input window, operand 2, single buffered']
    #allocation9 [shape = 'u8[4096]{0}', space=vmem, size = 0x1000, scoped, tag = 'output window, operand 0, single buffered']
    %8 = vsyncpa [#allocation4], 0
    %s9 = scalar_lea.sflag [#allocation4], 1
    %10 = vsyncpa %s9, 0
    %11 = vsyncpa [#allocation7], 0
    %s12 = scalar_lea.sflag [#allocation7], 1
    %13 = vsyncpa %s12, 0
    %14 = vsyncpa [#allocation5], 0
    loop: start=0, step=1, limit=5
    $region2: #{tpu_custom_call.1} parent=1 // loop_pre_header
      _
    $region3: #{tpu_custom_call.1} parent=1 // loop_header
      %s16 = sphi 0, %s20
      %p17 = scmp.ge.s32.totalorder %s16, 5
      %s23 = sphi 0, %s42
      %s24 = sphi 0, %s38
      %s25 = sphi 0, %s34
      %s26 = sphi 0, %s23
      %s27 = sphi 0, %s24
      %s28 = sphi 0, %s25
      %s29 = sphi 0, %s26
      %s30 = sphi 0, %s27
      %s31 = sphi 0, %s28
      %s47 = sphi 0, %s49
      %s50 = sphi 0, %s47
      %s51 = sphi 0, %s50
      %s67 = sphi 0, %s51
      %s75 = sphi 0, %s77
      %s78 = sphi 0, %s75
      %s79 = sphi 0, %s78
      %s95 = sphi 0, %s79
      %s101 = sphi 0, %s103
      %s104 = sphi 0, %s101
      %s105 = sphi 0, %s104
      %s121 = sphi 0, %s105
      %s129 = sphi 0, %s131
      %s132 = sphi 0, %s129
      %s133 = sphi 0, %s132
      %s149 = sphi 0, %s133
    $region4: #{tpu_custom_call.1} parent=1 // loop_header_branch
      %19 = sbr.rel (%p17) target = $region8
    $region5: #{tpu_custom_call.1} parent=1 // loop_body
      %s21 = ssub.s32 %s16, 1
      %s22 = ssub.s32 %s16, 2
      %s32 = sadd.s32 1, %s25
      %p33 = scmp.ge.s32.totalorder %s32, 3
      %s34 = scalar_select %p33, 0, %s32
      %s35 = sadd.s32 1, %s24
      %s36 = scalar_select %p33, %s35, %s24
      %p37 = scmp.ge.s32.totalorder %s36, 1
      %s38 = scalar_select %p37, 0, %s36
      %s39 = sadd.s32 1, %s23
      %s40 = scalar_select %p37, %s39, %s23
      %p41 = scmp.ge.s32.totalorder %s40, 1
      %s42 = scalar_select %p41, 0, %s40
      %s43 = ssub.s32 %s23, %s42
      %s44 = ssub.s32 %s25, %s34
      %s45 = sor.u32 %s43, %s44
      %p46 = scmp.eq.s32.totalorder %s45, 0
      %s48 = sadd.s32 %s47, 1
      %s49 = scalar_select %p46, %s47, %s48
      %p52 = pneg %p46
      %p53 = scmp.eq.s32.totalorder %s16, 2
      %p54 = por %p52, %p53
      %p55 = scmp.ne.s32.totalorder %s47, %s50
      %p56 = scmp.eq.s32.totalorder %s16, 0
      %p57 = por %p55, %p56
      %p58 = scmp.ne.s32.totalorder %s47, %s50
      %p59 = scmp.eq.s32.totalorder %s21, 2
      %p60 = por %p58, %p59
      %p61 = scmp.ne.s32.totalorder %s50, %s51
      %p62 = scmp.eq.s32.totalorder %s21, 0
      %p63 = por %p61, %p62
      %p64 = scmp.ne.s32.totalorder %s50, %s51
      %p65 = scmp.eq.s32.totalorder %s22, 2
      %p66 = por %p64, %p65
      %p68 = scmp.ne.s32.totalorder %s51, %s67
      %p69 = scmp.eq.s32.totalorder %s22, 0
      %p70 = por %p68, %p69
      %s71 = ssub.s32 %s25, %s34
      %s72 = ssub.s32 %s24, %s38
      %s73 = sor.u32 %s71, %s72
      %p74 = scmp.eq.s32.totalorder %s73, 0
      %s76 = sadd.s32 %s75, 1
      %s77 = scalar_select %p74, %s75, %s76
      %p80 = pneg %p74
      %p81 = scmp.eq.s32.totalorder %s16, 2
      %p82 = por %p80, %p81
      %p83 = scmp.ne.s32.totalorder %s75, %s78
      %p84 = scmp.eq.s32.totalorder %s16, 0
      %p85 = por %p83, %p84
      %p86 = scmp.ne.s32.totalorder %s75, %s78
      %p87 = scmp.eq.s32.totalorder %s21, 2
      %p88 = por %p86, %p87
      %p89 = scmp.ne.s32.totalorder %s78, %s79
      %p90 = scmp.eq.s32.totalorder %s21, 0
      %p91 = por %p89, %p90
      %p92 = scmp.ne.s32.totalorder %s78, %s79
      %p93 = scmp.eq.s32.totalorder %s22, 2
      %p94 = por %p92, %p93
      %p96 = scmp.ne.s32.totalorder %s79, %s95
      %p97 = scmp.eq.s32.totalorder %s22, 0
      %p98 = por %p96, %p97
      %s99 = ssub.s32 %s24, %s38
      %p100 = scmp.eq.s32.totalorder %s99, 0
      %s102 = sadd.s32 %s101, 1
      %s103 = scalar_select %p100, %s101, %s102
      %p106 = pneg %p100
      %p107 = scmp.eq.s32.totalorder %s16, 2
      %p108 = por %p106, %p107
      %p109 = scmp.ne.s32.totalorder %s101, %s104
      %p110 = scmp.eq.s32.totalorder %s16, 0
      %p111 = por %p109, %p110
      %p112 = scmp.ne.s32.totalorder %s101, %s104
      %p113 = scmp.eq.s32.totalorder %s21, 2
      %p114 = por %p112, %p113
      %p115 = scmp.ne.s32.totalorder %s104, %s105
      %p116 = scmp.eq.s32.totalorder %s21, 0
      %p117 = por %p115, %p116
      %p118 = scmp.ne.s32.totalorder %s104, %s105
      %p119 = scmp.eq.s32.totalorder %s22, 2
      %p120 = por %p118, %p119
      %p122 = scmp.ne.s32.totalorder %s105, %s121
      %p123 = scmp.eq.s32.totalorder %s22, 0
      %p124 = por %p122, %p123
      %s125 = ssub.s32 %s23, %s42
      %s126 = ssub.s32 %s24, %s38
      %s127 = sor.u32 %s125, %s126
      %p128 = scmp.eq.s32.totalorder %s127, 0
      %s130 = sadd.s32 %s129, 1
      %s131 = scalar_select %p128, %s129, %s130
      %p134 = pneg %p128
      %p135 = scmp.eq.s32.totalorder %s16, 2
      %p136 = por %p134, %p135
      %p137 = scmp.ne.s32.totalorder %s129, %s132
      %p138 = scmp.eq.s32.totalorder %s16, 0
      %p139 = por %p137, %p138
      %p140 = scmp.ne.s32.totalorder %s129, %s132
      %p141 = scmp.eq.s32.totalorder %s21, 2
      %p142 = por %p140, %p141
      %p143 = scmp.ne.s32.totalorder %s132, %s133
      %p144 = scmp.eq.s32.totalorder %s21, 0
      %p145 = por %p143, %p144
      %p146 = scmp.ne.s32.totalorder %s132, %s133
      %p147 = scmp.eq.s32.totalorder %s22, 2
      %p148 = por %p146, %p147
      %p150 = scmp.ne.s32.totalorder %s133, %s149
      %p151 = scmp.eq.s32.totalorder %s22, 0
      %p152 = por %p150, %p151
      %p153 = scmp.le.s32.totalorder 1, %s16
      %p154 = scmp.lt.s32.totalorder %s16, 4
      %p155 = pnand %p153, %p154
      %p156 = pneg %p155
      // Predicated region
      $region9: #{tpu_custom_call.1} parent=5 // pred_check
        _
      $region10: #{tpu_custom_call.1} parent=5 // pred_check_branch
        %158 = sbr.rel (%p155) target = $region12
      $region11: #{tpu_custom_call.1} parent=5 // pred_region
        %s159 = ssub.s32 %s16, 1
        // Predicated region
        $region13: #{tpu_custom_call.1} parent=11 // pred_check
          %p160 = pneg %p117
        $region14: #{tpu_custom_call.1} parent=11 // pred_check_branch
          %162 = sbr.rel (%p160) target = $region16
        $region15: #{tpu_custom_call.1} parent=11 // pred_region
          %s164 = ssub.s32 16, 16
          %165 = vsyncadd [#allocation7], %s164
          %s166 = smul.addr %s27, 16
          %s167 = scalar_lea.hbm %s2, %s166
          %s169 = sshll.u32 [#allocation8], 4
          %s170 = int_to_ptr.vmem [resolvable:$true] %s169
          %172 = dma.hbm_to_vmem [thread:$0]  %s167, 16, %s170, [#allocation7]
        $region16: #{tpu_custom_call.1} parent=11 // pred_fallthru
          _
      $region12: #{tpu_custom_call.1} parent=5 // pred_fallthru
        _
      %p173 = scmp.lt.s32.totalorder %s16, 3
      // Predicated region
      $region17: #{tpu_custom_call.1} parent=5 // pred_check
        %p174 = pneg %p173
      $region18: #{tpu_custom_call.1} parent=5 // pred_check_branch
        %176 = sbr.rel (%p174) target = $region20
      $region19: #{tpu_custom_call.1} parent=5 // pred_region
        // Predicated region
        $region21: #{tpu_custom_call.1} parent=19 // pred_check
          %p177 = pneg %p57
        $region22: #{tpu_custom_call.1} parent=19 // pred_check_branch
          %179 = sbr.rel (%p177) target = $region24
        $region23: #{tpu_custom_call.1} parent=19 // pred_region
          %s180 = sand.u32 %s47, 1
          %s181 = scalar_lea.sflag [#allocation4], %s180
          %s182 = sand.u32 %s47, 1
          %s183 = smul.addr %s182, 128
          %s184 = scalar_lea.vmem [#allocation3], %s183
          %s185 = smul.u32 16, %s25
          %s187 = ssub.s32 2048, 2048
          %188 = vsyncadd %s181, %s187
          %s189 = smul.addr %s23, 48
          %s190 = sadd.s32 %s185, %s189
          %s191 = smul.addr %s190, 128
          %s192 = scalar_lea.hbm %s0, %s191
          %s194 = sshll.u32 %s184, 4
          %s195 = int_to_ptr.vmem [resolvable:$true] %s194
          %197 = dma.hbm_to_vmem [thread:$0]  %s192, 2048, %s195, %s181
        $region24: #{tpu_custom_call.1} parent=19 // pred_fallthru
          _
        // Predicated region
        $region25: #{tpu_custom_call.1} parent=19 // pred_check
          %p198 = pneg %p85
        $region26: #{tpu_custom_call.1} parent=19 // pred_check_branch
          %200 = sbr.rel (%p198) target = $region28
        $region27: #{tpu_custom_call.1} parent=19 // pred_region
          %s201 = sand.u32 %s16, 1
          %s202 = scalar_lea.sflag [#allocation7], %s201
          %s203 = sand.u32 %s75, 1
          %s204 = smul.addr %s203, 1024
          %s205 = scalar_lea.vmem [#allocation6], %s204
          %s206 = smul.u32 256, %s25
          %s208 = ssub.s32 16384, 16384
          %209 = vsyncadd %s202, %s208
          %s210 = sadd.s32 %s24, %s206
          %s211 = smul.addr %s210, 64
          %s212 = scalar_lea.hbm %s1, %s211
          %s213 = sshll.u32 %s205, 4
          %s214 = int_to_ptr.vmem [resolvable:$true] %s213
          %219 = dma.hbm_to_vmem [thread:$0]  %s212, 16384, %s214, %s202, 64, 64, 4
        $region28: #{tpu_custom_call.1} parent=19 // pred_fallthru
          _
      $region20: #{tpu_custom_call.1} parent=5 // pred_fallthru
        _
      %p220 = scmp.le.s32.totalorder 1, %s16
      %p221 = scmp.lt.s32.totalorder %s16, 4
      %p222 = pnand %p220, %p221
      %p223 = pneg %p222
      // Predicated region
      $region29: #{tpu_custom_call.1} parent=5 // pred_check
        _
      $region30: #{tpu_custom_call.1} parent=5 // pred_check_branch
        %225 = sbr.rel (%p222) target = $region32
      $region31: #{tpu_custom_call.1} parent=5 // pred_region
        %s226 = ssub.s32 %s16, 1
        %s227 = sand.u32 %s50, 1
        %s228 = scalar_lea.sflag [#allocation4], %s227
        %s229 = sand.u32 %s50, 1
        %s230 = smul.addr %s229, 128
        %s231 = scalar_lea.vmem [#allocation3], %s230
        // Predicated region
        $region33: #{tpu_custom_call.1} parent=31 // pred_check
          %p232 = pneg %p63
        $region34: #{tpu_custom_call.1} parent=31 // pred_check_branch
          %234 = sbr.rel (%p232) target = $region36
        $region35: #{tpu_custom_call.1} parent=31 // pred_region
          %235 = dma.done %s228, 2048
        $region36: #{tpu_custom_call.1} parent=31 // pred_fallthru
          _
        %s236 = sand.u32 %s21, 1
        %s237 = scalar_lea.sflag [#allocation7], %s236
        %s238 = sand.u32 %s78, 1
        %s239 = smul.addr %s238, 1024
        %s240 = scalar_lea.vmem [#allocation6], %s239
        // Predicated region
        $region37: #{tpu_custom_call.1} parent=31 // pred_check
          %p241 = pneg %p91
        $region38: #{tpu_custom_call.1} parent=31 // pred_check_branch
          %243 = sbr.rel (%p241) target = $region40
        $region39: #{tpu_custom_call.1} parent=31 // pred_region
          %244 = dma.done %s237, 16384
        $region40: #{tpu_custom_call.1} parent=31 // pred_fallthru
          _
        // Predicated region
        $region41: #{tpu_custom_call.1} parent=31 // pred_check
          %p245 = pneg %p117
        $region42: #{tpu_custom_call.1} parent=31 // pred_check_branch
          %247 = sbr.rel (%p245) target = $region44
        $region43: #{tpu_custom_call.1} parent=31 // pred_region
          %248 = dma.done [#allocation7], 16
        $region44: #{tpu_custom_call.1} parent=31 // pred_fallthru
          _
        %s249 = sand.u32 %s50, 1
        %s250 = scalar_lea.sflag [#allocation4], %s249
        %s251 = sand.u32 %s50, 1
        %s252 = smul.addr %s251, 128
        %s253 = scalar_lea.vmem [#allocation3], %s252
        %p254 = pneg %p63
        %p255 = pneg %p60
        %s256 = sand.u32 %s21, 1
        %s257 = scalar_lea.sflag [#allocation7], %s256
        %s258 = sand.u32 %s78, 1
        %s259 = smul.addr %s258, 1024
        %s260 = scalar_lea.vmem [#allocation6], %s259
        %p261 = pneg %p91
        %p262 = pneg %p88
        %p263 = pneg %p117
        %p264 = pneg %p114
        %p265 = pneg %p145
        %p266 = pneg %p142
        %s267 = smul.u32 16, %s28
        %s268 = smul.u32 256, %s28
        %p270 = scmp.eq.s32.totalorder %s28, 0
        // Predicated region
        $region45: #{tpu_custom_call.1} parent=31 // pred_check
          %p271 = pneg %p270
        $region46: #{tpu_custom_call.1} parent=31 // pred_check_branch
          %273 = sbr.rel (%p271) target = $region48
        $region47: #{tpu_custom_call.1} parent=31 // pred_region
          %274 = vst [vmem:[#allocation2] sm:$0xff] 0.0
        $region48: #{tpu_custom_call.1} parent=31 // pred_fallthru
          _
        %v275 = vld [vmem:[#allocation2] sm:$0xff]
        %v276 = vld [vmem:[%s231] sm:$0xff]
        %v277 = vld [vmem:[%s231 + $0x8] sm:$0xff]
        %v278 = vld [vmem:[%s231 + $0x10] sm:$0xff]
        %v279 = vld [vmem:[%s231 + $0x18] sm:$0xff]
        %v280 = vld [vmem:[%s231 + $0x20] sm:$0xff]
        %v281 = vld [vmem:[%s231 + $0x28] sm:$0xff]
        %v282 = vld [vmem:[%s231 + $0x30] sm:$0xff]
        %v283 = vld [vmem:[%s231 + $0x38] sm:$0xff]
        %v284 = vld [vmem:[%s231 + $0x40] sm:$0xff]
        %v285 = vld [vmem:[%s231 + $0x48] sm:$0xff]
        %v286 = vld [vmem:[%s231 + $0x50] sm:$0xff]
        %v287 = vld [vmem:[%s231 + $0x58] sm:$0xff]
        %v288 = vld [vmem:[%s231 + $0x60] sm:$0xff]
        %v289 = vld [vmem:[%s231 + $0x68] sm:$0xff]
        %v290 = vld [vmem:[%s231 + $0x70] sm:$0xff]
        %v291 = vld [vmem:[%s231 + $0x78] sm:$0xff]
        %v292 = vpack.c.bf16 %v276, %v276
        %v293 = vpack.c.bf16 %v277, %v277
        %v294 = vpack.c.bf16 %v278, %v278
        %v295 = vpack.c.bf16 %v279, %v279
        %v296 = vpack.c.bf16 %v280, %v280
        %v297 = vpack.c.bf16 %v281, %v281
        %v298 = vpack.c.bf16 %v282, %v282
        %v299 = vpack.c.bf16 %v283, %v283
        %v300 = vpack.c.bf16 %v284, %v284
        %v301 = vpack.c.bf16 %v285, %v285
        %v302 = vpack.c.bf16 %v286, %v286
        %v303 = vpack.c.bf16 %v287, %v287
        %v304 = vpack.c.bf16 %v288, %v288
        %v305 = vpack.c.bf16 %v289, %v289
        %v306 = vpack.c.bf16 %v290, %v290
        %v307 = vpack.c.bf16 %v291, %v291
        %v308 = vld [vmem:[%s240] sm:$0xf]
        %v309 = vld [vmem:[%s240 + $0x4] sm:$0xf]
        %v310 = vld [vmem:[%s240 + $0x8] sm:$0xf]
        %v311 = vld [vmem:[%s240 + $0xc] sm:$0xf]
        %v312 = vld [vmem:[%s240 + $0x10] sm:$0xf]
        %v313 = vld [vmem:[%s240 + $0x14] sm:$0xf]
        %v314 = vld [vmem:[%s240 + $0x18] sm:$0xf]
        %v315 = vld [vmem:[%s240 + $0x1c] sm:$0xf]
        %v316 = vld [vmem:[%s240 + $0x20] sm:$0xf]
        %v317 = vld [vmem:[%s240 + $0x24] sm:$0xf]
        %v318 = vld [vmem:[%s240 + $0x28] sm:$0xf]
        %v319 = vld [vmem:[%s240 + $0x2c] sm:$0xf]
        %v320 = vld [vmem:[%s240 + $0x30] sm:$0xf]
        %v321 = vld [vmem:[%s240 + $0x34] sm:$0xf]
        %v322 = vld [vmem:[%s240 + $0x38] sm:$0xf]
        %v323 = vld [vmem:[%s240 + $0x3c] sm:$0xf]
        %v324 = vld [vmem:[%s240 + $0x40] sm:$0xf]
        %v325 = vld [vmem:[%s240 + $0x44] sm:$0xf]
        %v326 = vld [vmem:[%s240 + $0x48] sm:$0xf]
        %v327 = vld [vmem:[%s240 + $0x4c] sm:$0xf]
        %v328 = vld [vmem:[%s240 + $0x50] sm:$0xf]
        %v329 = vld [vmem:[%s240 + $0x54] sm:$0xf]
        %v330 = vld [vmem:[%s240 + $0x58] sm:$0xf]
        %v331 = vld [vmem:[%s240 + $0x5c] sm:$0xf]
        %v332 = vld [vmem:[%s240 + $0x60] sm:$0xf]
        %v333 = vld [vmem:[%s240 + $0x64] sm:$0xf]
        %v334 = vld [vmem:[%s240 + $0x68] sm:$0xf]
        %v335 = vld [vmem:[%s240 + $0x6c] sm:$0xf]
        %v336 = vld [vmem:[%s240 + $0x70] sm:$0xf]
        %v337 = vld [vmem:[%s240 + $0x74] sm:$0xf]
        %v338 = vld [vmem:[%s240 + $0x78] sm:$0xf]
        %v339 = vld [vmem:[%s240 + $0x7c] sm:$0xf]
        %v340 = vld [vmem:[%s240 + $0x80] sm:$0xf]
        %v341 = vld [vmem:[%s240 + $0x84] sm:$0xf]
        %v342 = vld [vmem:[%s240 + $0x88] sm:$0xf]
        %v343 = vld [vmem:[%s240 + $0x8c] sm:$0xf]
        %v344 = vld [vmem:[%s240 + $0x90] sm:$0xf]
        %v345 = vld [vmem:[%s240 + $0x94] sm:$0xf]
        %v346 = vld [vmem:[%s240 + $0x98] sm:$0xf]
        %v347 = vld [vmem:[%s240 + $0x9c] sm:$0xf]
        %v348 = vld [vmem:[%s240 + $0xa0] sm:$0xf]
        %v349 = vld [vmem:[%s240 + $0xa4] sm:$0xf]
        %v350 = vld [vmem:[%s240 + $0xa8] sm:$0xf]
        %v351 = vld [vmem:[%s240 + $0xac] sm:$0xf]
        %v352 = vld [vmem:[%s240 + $0xb0] sm:$0xf]
        %v353 = vld [vmem:[%s240 + $0xb4] sm:$0xf]
        %v354 = vld [vmem:[%s240 + $0xb8] sm:$0xf]
        %v355 = vld [vmem:[%s240 + $0xbc] sm:$0xf]
        %v356 = vld [vmem:[%s240 + $0xc0] sm:$0xf]
        %v357 = vld [vmem:[%s240 + $0xc4] sm:$0xf]
        %v358 = vld [vmem:[%s240 + $0xc8] sm:$0xf]
        %v359 = vld [vmem:[%s240 + $0xcc] sm:$0xf]
        %v360 = vld [vmem:[%s240 + $0xd0] sm:$0xf]
        %v361 = vld [vmem:[%s240 + $0xd4] sm:$0xf]
        %v362 = vld [vmem:[%s240 + $0xd8] sm:$0xf]
        %v363 = vld [vmem:[%s240 + $0xdc] sm:$0xf]
        %v364 = vld [vmem:[%s240 + $0xe0] sm:$0xf]
        %v365 = vld [vmem:[%s240 + $0xe4] sm:$0xf]
        %v366 = vld [vmem:[%s240 + $0xe8] sm:$0xf]
        %v367 = vld [vmem:[%s240 + $0xec] sm:$0xf]
        %v368 = vld [vmem:[%s240 + $0xf0] sm:$0xf]
        %v369 = vld [vmem:[%s240 + $0xf4] sm:$0xf]
        %v370 = vld [vmem:[%s240 + $0xf8] sm:$0xf]
        %v371 = vld [vmem:[%s240 + $0xfc] sm:$0xf]
        %v372 = vld [vmem:[%s240 + $0x100] sm:$0xf]
        %v373 = vld [vmem:[%s240 + $0x104] sm:$0xf]
        %v374 = vld [vmem:[%s240 + $0x108] sm:$0xf]
        %v375 = vld [vmem:[%s240 + $0x10c] sm:$0xf]
        %v376 = vld [vmem:[%s240 + $0x110] sm:$0xf]
        %v377 = vld [vmem:[%s240 + $0x114] sm:$0xf]
        %v378 = vld [vmem:[%s240 + $0x118] sm:$0xf]
        %v379 = vld [vmem:[%s240 + $0x11c] sm:$0xf]
        %v380 = vld [vmem:[%s240 + $0x120] sm:$0xf]
        %v381 = vld [vmem:[%s240 + $0x124] sm:$0xf]
        %v382 = vld [vmem:[%s240 + $0x128] sm:$0xf]
        %v383 = vld [vmem:[%s240 + $0x12c] sm:$0xf]
        %v384 = vld [vmem:[%s240 + $0x130] sm:$0xf]
        %v385 = vld [vmem:[%s240 + $0x134] sm:$0xf]
        %v386 = vld [vmem:[%s240 + $0x138] sm:$0xf]
        %v387 = vld [vmem:[%s240 + $0x13c] sm:$0xf]
        %v388 = vld [vmem:[%s240 + $0x140] sm:$0xf]
        %v389 = vld [vmem:[%s240 + $0x144] sm:$0xf]
        %v390 = vld [vmem:[%s240 + $0x148] sm:$0xf]
        %v391 = vld [vmem:[%s240 + $0x14c] sm:$0xf]
        %v392 = vld [vmem:[%s240 + $0x150] sm:$0xf]
        %v393 = vld [vmem:[%s240 + $0x154] sm:$0xf]
        %v394 = vld [vmem:[%s240 + $0x158] sm:$0xf]
        %v395 = vld [vmem:[%s240 + $0x15c] sm:$0xf]
        %v396 = vld [vmem:[%s240 + $0x160] sm:$0xf]
        %v397 = vld [vmem:[%s240 + $0x164] sm:$0xf]
        %v398 = vld [vmem:[%s240 + $0x168] sm:$0xf]
        %v399 = vld [vmem:[%s240 + $0x16c] sm:$0xf]
        %v400 = vld [vmem:[%s240 + $0x170] sm:$0xf]
        %v401 = vld [vmem:[%s240 + $0x174] sm:$0xf]
        %v402 = vld [vmem:[%s240 + $0x178] sm:$0xf]
        %v403 = vld [vmem:[%s240 + $0x17c] sm:$0xf]
        %v404 = vld [vmem:[%s240 + $0x180] sm:$0xf]
        %v405 = vld [vmem:[%s240 + $0x184] sm:$0xf]
        %v406 = vld [vmem:[%s240 + $0x188] sm:$0xf]
        %v407 = vld [vmem:[%s240 + $0x18c] sm:$0xf]
        %v408 = vld [vmem:[%s240 + $0x190] sm:$0xf]
        %v409 = vld [vmem:[%s240 + $0x194] sm:$0xf]
        %v410 = vld [vmem:[%s240 + $0x198] sm:$0xf]
        %v411 = vld [vmem:[%s240 + $0x19c] sm:$0xf]
        %v412 = vld [vmem:[%s240 + $0x1a0] sm:$0xf]
        %v413 = vld [vmem:[%s240 + $0x1a4] sm:$0xf]
        %v414 = vld [vmem:[%s240 + $0x1a8] sm:$0xf]
        %v415 = vld [vmem:[%s240 + $0x1ac] sm:$0xf]
        %v416 = vld [vmem:[%s240 + $0x1b0] sm:$0xf]
        %v417 = vld [vmem:[%s240 + $0x1b4] sm:$0xf]
        %v418 = vld [vmem:[%s240 + $0x1b8] sm:$0xf]
        %v419 = vld [vmem:[%s240 + $0x1bc] sm:$0xf]
        %v420 = vld [vmem:[%s240 + $0x1c0] sm:$0xf]
        %v421 = vld [vmem:[%s240 + $0x1c4] sm:$0xf]
        %v422 = vld [vmem:[%s240 + $0x1c8] sm:$0xf]
        %v423 = vld [vmem:[%s240 + $0x1cc] sm:$0xf]
        %v424 = vld [vmem:[%s240 + $0x1d0] sm:$0xf]
        %v425 = vld [vmem:[%s240 + $0x1d4] sm:$0xf]
        %v426 = vld [vmem:[%s240 + $0x1d8] sm:$0xf]
        %v427 = vld [vmem:[%s240 + $0x1dc] sm:$0xf]
        %v428 = vld [vmem:[%s240 + $0x1e0] sm:$0xf]
        %v429 = vld [vmem:[%s240 + $0x1e4] sm:$0xf]
        %v430 = vld [vmem:[%s240 + $0x1e8] sm:$0xf]
        %v431 = vld [vmem:[%s240 + $0x1ec] sm:$0xf]
        %v432 = vld [vmem:[%s240 + $0x1f0] sm:$0xf]
        %v433 = vld [vmem:[%s240 + $0x1f4] sm:$0xf]
        %v434 = vld [vmem:[%s240 + $0x1f8] sm:$0xf]
        %v435 = vld [vmem:[%s240 + $0x1fc] sm:$0xf]
        %v436 = vld [vmem:[%s240 + $0x200] sm:$0xf]
        %v437 = vld [vmem:[%s240 + $0x204] sm:$0xf]
        %v438 = vld [vmem:[%s240 + $0x208] sm:$0xf]
        %v439 = vld [vmem:[%s240 + $0x20c] sm:$0xf]
        %v440 = vld [vmem:[%s240 + $0x210] sm:$0xf]
        %v441 = vld [vmem:[%s240 + $0x214] sm:$0xf]
        %v442 = vld [vmem:[%s240 + $0x218] sm:$0xf]
        %v443 = vld [vmem:[%s240 + $0x21c] sm:$0xf]
        %v444 = vld [vmem:[%s240 + $0x220] sm:$0xf]
        %v445 = vld [vmem:[%s240 + $0x224] sm:$0xf]
        %v446 = vld [vmem:[%s240 + $0x228] sm:$0xf]
        %v447 = vld [vmem:[%s240 + $0x22c] sm:$0xf]
        %v448 = vld [vmem:[%s240 + $0x230] sm:$0xf]
        %v449 = vld [vmem:[%s240 + $0x234] sm:$0xf]
        %v450 = vld [vmem:[%s240 + $0x238] sm:$0xf]
        %v451 = vld [vmem:[%s240 + $0x23c] sm:$0xf]
        %v452 = vld [vmem:[%s240 + $0x240] sm:$0xf]
        %v453 = vld [vmem:[%s240 + $0x244] sm:$0xf]
        %v454 = vld [vmem:[%s240 + $0x248] sm:$0xf]
        %v455 = vld [vmem:[%s240 + $0x24c] sm:$0xf]
        %v456 = vld [vmem:[%s240 + $0x250] sm:$0xf]
        %v457 = vld [vmem:[%s240 + $0x254] sm:$0xf]
        %v458 = vld [vmem:[%s240 + $0x258] sm:$0xf]
        %v459 = vld [vmem:[%s240 + $0x25c] sm:$0xf]
        %v460 = vld [vmem:[%s240 + $0x260] sm:$0xf]
        %v461 = vld [vmem:[%s240 + $0x264] sm:$0xf]
        %v462 = vld [vmem:[%s240 + $0x268] sm:$0xf]
        %v463 = vld [vmem:[%s240 + $0x26c] sm:$0xf]
        %v464 = vld [vmem:[%s240 + $0x270] sm:$0xf]
        %v465 = vld [vmem:[%s240 + $0x274] sm:$0xf]
        %v466 = vld [vmem:[%s240 + $0x278] sm:$0xf]
        %v467 = vld [vmem:[%s240 + $0x27c] sm:$0xf]
        %v468 = vld [vmem:[%s240 + $0x280] sm:$0xf]
        %v469 = vld [vmem:[%s240 + $0x284] sm:$0xf]
        %v470 = vld [vmem:[%s240 + $0x288] sm:$0xf]
        %v471 = vld [vmem:[%s240 + $0x28c] sm:$0xf]
        %v472 = vld [vmem:[%s240 + $0x290] sm:$0xf]
        %v473 = vld [vmem:[%s240 + $0x294] sm:$0xf]
        %v474 = vld [vmem:[%s240 + $0x298] sm:$0xf]
        %v475 = vld [vmem:[%s240 + $0x29c] sm:$0xf]
        %v476 = vld [vmem:[%s240 + $0x2a0] sm:$0xf]
        %v477 = vld [vmem:[%s240 + $0x2a4] sm:$0xf]
        %v478 = vld [vmem:[%s240 + $0x2a8] sm:$0xf]
        %v479 = vld [vmem:[%s240 + $0x2ac] sm:$0xf]
        %v480 = vld [vmem:[%s240 + $0x2b0] sm:$0xf]
        %v481 = vld [vmem:[%s240 + $0x2b4] sm:$0xf]
        %v482 = vld [vmem:[%s240 + $0x2b8] sm:$0xf]
        %v483 = vld [vmem:[%s240 + $0x2bc] sm:$0xf]
        %v484 = vld [vmem:[%s240 + $0x2c0] sm:$0xf]
        %v485 = vld [vmem:[%s240 + $0x2c4] sm:$0xf]
        %v486 = vld [vmem:[%s240 + $0x2c8] sm:$0xf]
        %v487 = vld [vmem:[%s240 + $0x2cc] sm:$0xf]
        %v488 = vld [vmem:[%s240 + $0x2d0] sm:$0xf]
        %v489 = vld [vmem:[%s240 + $0x2d4] sm:$0xf]
        %v490 = vld [vmem:[%s240 + $0x2d8] sm:$0xf]
        %v491 = vld [vmem:[%s240 + $0x2dc] sm:$0xf]
        %v492 = vld [vmem:[%s240 + $0x2e0] sm:$0xf]
        %v493 = vld [vmem:[%s240 + $0x2e4] sm:$0xf]
        %v494 = vld [vmem:[%s240 + $0x2e8] sm:$0xf]
        %v495 = vld [vmem:[%s240 + $0x2ec] sm:$0xf]
        %v496 = vld [vmem:[%s240 + $0x2f0] sm:$0xf]
        %v497 = vld [vmem:[%s240 + $0x2f4] sm:$0xf]
        %v498 = vld [vmem:[%s240 + $0x2f8] sm:$0xf]
        %v499 = vld [vmem:[%s240 + $0x2fc] sm:$0xf]
        %v500 = vld [vmem:[%s240 + $0x300] sm:$0xf]
        %v501 = vld [vmem:[%s240 + $0x304] sm:$0xf]
        %v502 = vld [vmem:[%s240 + $0x308] sm:$0xf]
        %v503 = vld [vmem:[%s240 + $0x30c] sm:$0xf]
        %v504 = vld [vmem:[%s240 + $0x310] sm:$0xf]
        %v505 = vld [vmem:[%s240 + $0x314] sm:$0xf]
        %v506 = vld [vmem:[%s240 + $0x318] sm:$0xf]
        %v507 = vld [vmem:[%s240 + $0x31c] sm:$0xf]
        %v508 = vld [vmem:[%s240 + $0x320] sm:$0xf]
        %v509 = vld [vmem:[%s240 + $0x324] sm:$0xf]
        %v510 = vld [vmem:[%s240 + $0x328] sm:$0xf]
        %v511 = vld [vmem:[%s240 + $0x32c] sm:$0xf]
        %v512 = vld [vmem:[%s240 + $0x330] sm:$0xf]
        %v513 = vld [vmem:[%s240 + $0x334] sm:$0xf]
        %v514 = vld [vmem:[%s240 + $0x338] sm:$0xf]
        %v515 = vld [vmem:[%s240 + $0x33c] sm:$0xf]
        %v516 = vld [vmem:[%s240 + $0x340] sm:$0xf]
        %v517 = vld [vmem:[%s240 + $0x344] sm:$0xf]
        %v518 = vld [vmem:[%s240 + $0x348] sm:$0xf]
        %v519 = vld [vmem:[%s240 + $0x34c] sm:$0xf]
        %v520 = vld [vmem:[%s240 + $0x350] sm:$0xf]
        %v521 = vld [vmem:[%s240 + $0x354] sm:$0xf]
        %v522 = vld [vmem:[%s240 + $0x358] sm:$0xf]
        %v523 = vld [vmem:[%s240 + $0x35c] sm:$0xf]
        %v524 = vld [vmem:[%s240 + $0x360] sm:$0xf]
        %v525 = vld [vmem:[%s240 + $0x364] sm:$0xf]
        %v526 = vld [vmem:[%s240 + $0x368] sm:$0xf]
        %v527 = vld [vmem:[%s240 + $0x36c] sm:$0xf]
        %v528 = vld [vmem:[%s240 + $0x370] sm:$0xf]
        %v529 = vld [vmem:[%s240 + $0x374] sm:$0xf]
        %v530 = vld [vmem:[%s240 + $0x378] sm:$0xf]
        %v531 = vld [vmem:[%s240 + $0x37c] sm:$0xf]
        %v532 = vld [vmem:[%s240 + $0x380] sm:$0xf]
        %v533 = vld [vmem:[%s240 + $0x384] sm:$0xf]
        %v534 = vld [vmem:[%s240 + $0x388] sm:$0xf]
        %v535 = vld [vmem:[%s240 + $0x38c] sm:$0xf]
        %v536 = vld [vmem:[%s240 + $0x390] sm:$0xf]
        %v537 = vld [vmem:[%s240 + $0x394] sm:$0xf]
        %v538 = vld [vmem:[%s240 + $0x398] sm:$0xf]
        %v539 = vld [vmem:[%s240 + $0x39c] sm:$0xf]
        %v540 = vld [vmem:[%s240 + $0x3a0] sm:$0xf]
        %v541 = vld [vmem:[%s240 + $0x3a4] sm:$0xf]
        %v542 = vld [vmem:[%s240 + $0x3a8] sm:$0xf]
        %v543 = vld [vmem:[%s240 + $0x3ac] sm:$0xf]
        %v544 = vld [vmem:[%s240 + $0x3b0] sm:$0xf]
        %v545 = vld [vmem:[%s240 + $0x3b4] sm:$0xf]
        %v546 = vld [vmem:[%s240 + $0x3b8] sm:$0xf]
        %v547 = vld [vmem:[%s240 + $0x3bc] sm:$0xf]
        %v548 = vld [vmem:[%s240 + $0x3c0] sm:$0xf]
        %v549 = vld [vmem:[%s240 + $0x3c4] sm:$0xf]
        %v550 = vld [vmem:[%s240 + $0x3c8] sm:$0xf]
        %v551 = vld [vmem:[%s240 + $0x3cc] sm:$0xf]
        %v552 = vld [vmem:[%s240 + $0x3d0] sm:$0xf]
        %v553 = vld [vmem:[%s240 + $0x3d4] sm:$0xf]
        %v554 = vld [vmem:[%s240 + $0x3d8] sm:$0xf]
        %v555 = vld [vmem:[%s240 + $0x3dc] sm:$0xf]
        %v556 = vld [vmem:[%s240 + $0x3e0] sm:$0xf]
        %v557 = vld [vmem:[%s240 + $0x3e4] sm:$0xf]
        %v558 = vld [vmem:[%s240 + $0x3e8] sm:$0xf]
        %v559 = vld [vmem:[%s240 + $0x3ec] sm:$0xf]
        %v560 = vld [vmem:[%s240 + $0x3f0] sm:$0xf]
        %v561 = vld [vmem:[%s240 + $0x3f4] sm:$0xf]
        %v562 = vld [vmem:[%s240 + $0x3f8] sm:$0xf]
        %v563 = vld [vmem:[%s240 + $0x3fc] sm:$0xf]
        %v820 = vunpack.c.l.b16 %v308
        %v821 = vunpack.c.l.b16 %v309
        %v822 = vunpack.c.l.b16 %v310
        %v823 = vunpack.c.l.b16 %v311
        %v824 = vunpack.c.l.b16 %v312
        %v825 = vunpack.c.l.b16 %v313
        %v826 = vunpack.c.l.b16 %v314
        %v827 = vunpack.c.l.b16 %v315
        %v828 = vunpack.c.l.b16 %v316
        %v829 = vunpack.c.l.b16 %v317
        %v830 = vunpack.c.l.b16 %v318
        %v831 = vunpack.c.l.b16 %v319
        %v832 = vunpack.c.l.b16 %v320
        %v833 = vunpack.c.l.b16 %v321
        %v834 = vunpack.c.l.b16 %v322
        %v835 = vunpack.c.l.b16 %v323
        %v836 = vunpack.c.l.b16 %v324
        %v837 = vunpack.c.l.b16 %v325
        %v838 = vunpack.c.l.b16 %v326
        %v839 = vunpack.c.l.b16 %v327
        %v840 = vunpack.c.l.b16 %v328
        %v841 = vunpack.c.l.b16 %v329
        %v842 = vunpack.c.l.b16 %v330
        %v843 = vunpack.c.l.b16 %v331
        %v844 = vunpack.c.l.b16 %v332
        %v845 = vunpack.c.l.b16 %v333
        %v846 = vunpack.c.l.b16 %v334
        %v847 = vunpack.c.l.b16 %v335
        %v848 = vunpack.c.l.b16 %v336
        %v849 = vunpack.c.l.b16 %v337
        %v850 = vunpack.c.l.b16 %v338
        %v851 = vunpack.c.l.b16 %v339
        %v852 = vunpack.c.l.b16 %v340
        %v853 = vunpack.c.l.b16 %v341
        %v854 = vunpack.c.l.b16 %v342
        %v855 = vunpack.c.l.b16 %v343
        %v856 = vunpack.c.l.b16 %v344
        %v857 = vunpack.c.l.b16 %v345
        %v858 = vunpack.c.l.b16 %v346
        %v859 = vunpack.c.l.b16 %v347
        %v860 = vunpack.c.l.b16 %v348
        %v861 = vunpack.c.l.b16 %v349
        %v862 = vunpack.c.l.b16 %v350
        %v863 = vunpack.c.l.b16 %v351
        %v864 = vunpack.c.l.b16 %v352
        %v865 = vunpack.c.l.b16 %v353
        %v866 = vunpack.c.l.b16 %v354
        %v867 = vunpack.c.l.b16 %v355
        %v868 = vunpack.c.l.b16 %v356
        %v869 = vunpack.c.l.b16 %v357
        %v870 = vunpack.c.l.b16 %v358
        %v871 = vunpack.c.l.b16 %v359
        %v872 = vunpack.c.l.b16 %v360
        %v873 = vunpack.c.l.b16 %v361
        %v874 = vunpack.c.l.b16 %v362
        %v875 = vunpack.c.l.b16 %v363
        %v876 = vunpack.c.l.b16 %v364
        %v877 = vunpack.c.l.b16 %v365
        %v878 = vunpack.c.l.b16 %v366
        %v879 = vunpack.c.l.b16 %v367
        %v880 = vunpack.c.l.b16 %v368
        %v881 = vunpack.c.l.b16 %v369
        %v882 = vunpack.c.l.b16 %v370
        %v883 = vunpack.c.l.b16 %v371
        %v884 = vunpack.c.l.b16 %v372
        %v885 = vunpack.c.l.b16 %v373
        %v886 = vunpack.c.l.b16 %v374
        %v887 = vunpack.c.l.b16 %v375
        %v888 = vunpack.c.l.b16 %v376
        %v889 = vunpack.c.l.b16 %v377
        %v890 = vunpack.c.l.b16 %v378
        %v891 = vunpack.c.l.b16 %v379
        %v892 = vunpack.c.l.b16 %v380
        %v893 = vunpack.c.l.b16 %v381
        %v894 = vunpack.c.l.b16 %v382
        %v895 = vunpack.c.l.b16 %v383
        %v896 = vunpack.c.l.b16 %v384
        %v897 = vunpack.c.l.b16 %v385
        %v898 = vunpack.c.l.b16 %v386
        %v899 = vunpack.c.l.b16 %v387
        %v900 = vunpack.c.l.b16 %v388
        %v901 = vunpack.c.l.b16 %v389
        %v902 = vunpack.c.l.b16 %v390
        %v903 = vunpack.c.l.b16 %v391
        %v904 = vunpack.c.l.b16 %v392
        %v905 = vunpack.c.l.b16 %v393
        %v906 = vunpack.c.l.b16 %v394
        %v907 = vunpack.c.l.b16 %v395
        %v908 = vunpack.c.l.b16 %v396
        %v909 = vunpack.c.l.b16 %v397
        %v910 = vunpack.c.l.b16 %v398
        %v911 = vunpack.c.l.b16 %v399
        %v912 = vunpack.c.l.b16 %v400
        %v913 = vunpack.c.l.b16 %v401
        %v914 = vunpack.c.l.b16 %v402
        %v915 = vunpack.c.l.b16 %v403
        %v916 = vunpack.c.l.b16 %v404
        %v917 = vunpack.c.l.b16 %v405
        %v918 = vunpack.c.l.b16 %v406
        %v919 = vunpack.c.l.b16 %v407
        %v920 = vunpack.c.l.b16 %v408
        %v921 = vunpack.c.l.b16 %v409
        %v922 = vunpack.c.l.b16 %v410
        %v923 = vunpack.c.l.b16 %v411
        %v924 = vunpack.c.l.b16 %v412
        %v925 = vunpack.c.l.b16 %v413
        %v926 = vunpack.c.l.b16 %v414
        %v927 = vunpack.c.l.b16 %v415
        %v928 = vunpack.c.l.b16 %v416
        %v929 = vunpack.c.l.b16 %v417
        %v930 = vunpack.c.l.b16 %v418
        %v931 = vunpack.c.l.b16 %v419
        %v932 = vunpack.c.l.b16 %v420
        %v933 = vunpack.c.l.b16 %v421
        %v934 = vunpack.c.l.b16 %v422
        %v935 = vunpack.c.l.b16 %v423
        %v936 = vunpack.c.l.b16 %v424
        %v937 = vunpack.c.l.b16 %v425
        %v938 = vunpack.c.l.b16 %v426
        %v939 = vunpack.c.l.b16 %v427
        %v940 = vunpack.c.l.b16 %v428
        %v941 = vunpack.c.l.b16 %v429
        %v942 = vunpack.c.l.b16 %v430
        %v943 = vunpack.c.l.b16 %v431
        %v944 = vunpack.c.l.b16 %v432
        %v945 = vunpack.c.l.b16 %v433
        %v946 = vunpack.c.l.b16 %v434
        %v947 = vunpack.c.l.b16 %v435
        %v948 = vunpack.c.l.b16 %v436
        %v949 = vunpack.c.l.b16 %v437
        %v950 = vunpack.c.l.b16 %v438
        %v951 = vunpack.c.l.b16 %v439
        %v952 = vunpack.c.l.b16 %v440
        %v953 = vunpack.c.l.b16 %v441
        %v954 = vunpack.c.l.b16 %v442
        %v955 = vunpack.c.l.b16 %v443
        %v956 = vunpack.c.l.b16 %v444
        %v957 = vunpack.c.l.b16 %v445
        %v958 = vunpack.c.l.b16 %v446
        %v959 = vunpack.c.l.b16 %v447
        %v960 = vunpack.c.l.b16 %v448
        %v961 = vunpack.c.l.b16 %v449
        %v962 = vunpack.c.l.b16 %v450
        %v963 = vunpack.c.l.b16 %v451
        %v964 = vunpack.c.l.b16 %v452
        %v965 = vunpack.c.l.b16 %v453
        %v966 = vunpack.c.l.b16 %v454
        %v967 = vunpack.c.l.b16 %v455
        %v968 = vunpack.c.l.b16 %v456
        %v969 = vunpack.c.l.b16 %v457
        %v970 = vunpack.c.l.b16 %v458
        %v971 = vunpack.c.l.b16 %v459
        %v972 = vunpack.c.l.b16 %v460
        %v973 = vunpack.c.l.b16 %v461
        %v974 = vunpack.c.l.b16 %v462
        %v975 = vunpack.c.l.b16 %v463
        %v976 = vunpack.c.l.b16 %v464
        %v977 = vunpack.c.l.b16 %v465
        %v978 = vunpack.c.l.b16 %v466
        %v979 = vunpack.c.l.b16 %v467
        %v980 = vunpack.c.l.b16 %v468
        %v981 = vunpack.c.l.b16 %v469
        %v982 = vunpack.c.l.b16 %v470
        %v983 = vunpack.c.l.b16 %v471
        %v984 = vunpack.c.l.b16 %v472
        %v985 = vunpack.c.l.b16 %v473
        %v986 = vunpack.c.l.b16 %v474
        %v987 = vunpack.c.l.b16 %v475
        %v988 = vunpack.c.l.b16 %v476
        %v989 = vunpack.c.l.b16 %v477
        %v990 = vunpack.c.l.b16 %v478
        %v991 = vunpack.c.l.b16 %v479
        %v992 = vunpack.c.l.b16 %v480
        %v993 = vunpack.c.l.b16 %v481
        %v994 = vunpack.c.l.b16 %v482
        %v995 = vunpack.c.l.b16 %v483
        %v996 = vunpack.c.l.b16 %v484
        %v997 = vunpack.c.l.b16 %v485
        %v998 = vunpack.c.l.b16 %v486
        %v999 = vunpack.c.l.b16 %v487
        %v1000 = vunpack.c.l.b16 %v488
        %v1001 = vunpack.c.l.b16 %v489
        %v1002 = vunpack.c.l.b16 %v490
        %v1003 = vunpack.c.l.b16 %v491
        %v1004 = vunpack.c.l.b16 %v492
        %v1005 = vunpack.c.l.b16 %v493
        %v1006 = vunpack.c.l.b16 %v494
        %v1007 = vunpack.c.l.b16 %v495
        %v1008 = vunpack.c.l.b16 %v496
        %v1009 = vunpack.c.l.b16 %v497
        %v1010 = vunpack.c.l.b16 %v498
        %v1011 = vunpack.c.l.b16 %v499
        %v1012 = vunpack.c.l.b16 %v500
        %v1013 = vunpack.c.l.b16 %v501
        %v1014 = vunpack.c.l.b16 %v502
        %v1015 = vunpack.c.l.b16 %v503
        %v1016 = vunpack.c.l.b16 %v504
        %v1017 = vunpack.c.l.b16 %v505
        %v1018 = vunpack.c.l.b16 %v506
        %v1019 = vunpack.c.l.b16 %v507
        %v1020 = vunpack.c.l.b16 %v508
        %v1021 = vunpack.c.l.b16 %v509
        %v1022 = vunpack.c.l.b16 %v510
        %v1023 = vunpack.c.l.b16 %v511
        %v1024 = vunpack.c.l.b16 %v512
        %v1025 = vunpack.c.l.b16 %v513
        %v1026 = vunpack.c.l.b16 %v514
        %v1027 = vunpack.c.l.b16 %v515
        %v1028 = vunpack.c.l.b16 %v516
        %v1029 = vunpack.c.l.b16 %v517
        %v1030 = vunpack.c.l.b16 %v518
        %v1031 = vunpack.c.l.b16 %v519
        %v1032 = vunpack.c.l.b16 %v520
        %v1033 = vunpack.c.l.b16 %v521
        %v1034 = vunpack.c.l.b16 %v522
        %v1035 = vunpack.c.l.b16 %v523
        %v1036 = vunpack.c.l.b16 %v524
        %v1037 = vunpack.c.l.b16 %v525
        %v1038 = vunpack.c.l.b16 %v526
        %v1039 = vunpack.c.l.b16 %v527
        %v1040 = vunpack.c.l.b16 %v528
        %v1041 = vunpack.c.l.b16 %v529
        %v1042 = vunpack.c.l.b16 %v530
        %v1043 = vunpack.c.l.b16 %v531
        %v1044 = vunpack.c.l.b16 %v532
        %v1045 = vunpack.c.l.b16 %v533
        %v1046 = vunpack.c.l.b16 %v534
        %v1047 = vunpack.c.l.b16 %v535
        %v1048 = vunpack.c.l.b16 %v536
        %v1049 = vunpack.c.l.b16 %v537
        %v1050 = vunpack.c.l.b16 %v538
        %v1051 = vunpack.c.l.b16 %v539
        %v1052 = vunpack.c.l.b16 %v540
        %v1053 = vunpack.c.l.b16 %v541
        %v1054 = vunpack.c.l.b16 %v542
        %v1055 = vunpack.c.l.b16 %v543
        %v1056 = vunpack.c.l.b16 %v544
        %v1057 = vunpack.c.l.b16 %v545
        %v1058 = vunpack.c.l.b16 %v546
        %v1059 = vunpack.c.l.b16 %v547
        %v1060 = vunpack.c.l.b16 %v548
        %v1061 = vunpack.c.l.b16 %v549
        %v1062 = vunpack.c.l.b16 %v550
        %v1063 = vunpack.c.l.b16 %v551
        %v1064 = vunpack.c.l.b16 %v552
        %v1065 = vunpack.c.l.b16 %v553
        %v1066 = vunpack.c.l.b16 %v554
        %v1067 = vunpack.c.l.b16 %v555
        %v1068 = vunpack.c.l.b16 %v556
        %v1069 = vunpack.c.l.b16 %v557
        %v1070 = vunpack.c.l.b16 %v558
        %v1071 = vunpack.c.l.b16 %v559
        %v1072 = vunpack.c.l.b16 %v560
        %v1073 = vunpack.c.l.b16 %v561
        %v1074 = vunpack.c.l.b16 %v562
        %v1075 = vunpack.c.l.b16 %v563
        %v1076 = vpack.c.b16 %v821, %v820
        %v1077 = vpack.c.b16 %v823, %v822
        %v1078 = vpack.c.b16 %v825, %v824
        %v1079 = vpack.c.b16 %v827, %v826
        %v1080 = vpack.c.b16 %v829, %v828
        %v1081 = vpack.c.b16 %v831, %v830
        %v1082 = vpack.c.b16 %v833, %v832
        %v1083 = vpack.c.b16 %v835, %v834
        %v1084 = vpack.c.b16 %v837, %v836
        %v1085 = vpack.c.b16 %v839, %v838
        %v1086 = vpack.c.b16 %v841, %v840
        %v1087 = vpack.c.b16 %v843, %v842
        %v1088 = vpack.c.b16 %v845, %v844
        %v1089 = vpack.c.b16 %v847, %v846
        %v1090 = vpack.c.b16 %v849, %v848
        %v1091 = vpack.c.b16 %v851, %v850
        %v1092 = vpack.c.b16 %v853, %v852
        %v1093 = vpack.c.b16 %v855, %v854
        %v1094 = vpack.c.b16 %v857, %v856
        %v1095 = vpack.c.b16 %v859, %v858
        %v1096 = vpack.c.b16 %v861, %v860
        %v1097 = vpack.c.b16 %v863, %v862
        %v1098 = vpack.c.b16 %v865, %v864
        %v1099 = vpack.c.b16 %v867, %v866
        %v1100 = vpack.c.b16 %v869, %v868
        %v1101 = vpack.c.b16 %v871, %v870
        %v1102 = vpack.c.b16 %v873, %v872
        %v1103 = vpack.c.b16 %v875, %v874
        %v1104 = vpack.c.b16 %v877, %v876
        %v1105 = vpack.c.b16 %v879, %v878
        %v1106 = vpack.c.b16 %v881, %v880
        %v1107 = vpack.c.b16 %v883, %v882
        %v1108 = vpack.c.b16 %v885, %v884
        %v1109 = vpack.c.b16 %v887, %v886
        %v1110 = vpack.c.b16 %v889, %v888
        %v1111 = vpack.c.b16 %v891, %v890
        %v1112 = vpack.c.b16 %v893, %v892
        %v1113 = vpack.c.b16 %v895, %v894
        %v1114 = vpack.c.b16 %v897, %v896
        %v1115 = vpack.c.b16 %v899, %v898
        %v1116 = vpack.c.b16 %v901, %v900
        %v1117 = vpack.c.b16 %v903, %v902
        %v1118 = vpack.c.b16 %v905, %v904
        %v1119 = vpack.c.b16 %v907, %v906
        %v1120 = vpack.c.b16 %v909, %v908
        %v1121 = vpack.c.b16 %v911, %v910
        %v1122 = vpack.c.b16 %v913, %v912
        %v1123 = vpack.c.b16 %v915, %v914
        %v1124 = vpack.c.b16 %v917, %v916
        %v1125 = vpack.c.b16 %v919, %v918
        %v1126 = vpack.c.b16 %v921, %v920
        %v1127 = vpack.c.b16 %v923, %v922
        %v1128 = vpack.c.b16 %v925, %v924
        %v1129 = vpack.c.b16 %v927, %v926
        %v1130 = vpack.c.b16 %v929, %v928
        %v1131 = vpack.c.b16 %v931, %v930
        %v1132 = vpack.c.b16 %v933, %v932
        %v1133 = vpack.c.b16 %v935, %v934
        %v1134 = vpack.c.b16 %v937, %v936
        %v1135 = vpack.c.b16 %v939, %v938
        %v1136 = vpack.c.b16 %v941, %v940
        %v1137 = vpack.c.b16 %v943, %v942
        %v1138 = vpack.c.b16 %v945, %v944
        %v1139 = vpack.c.b16 %v947, %v946
        %v1140 = vpack.c.b16 %v949, %v948
        %v1141 = vpack.c.b16 %v951, %v950
        %v1142 = vpack.c.b16 %v953, %v952
        %v1143 = vpack.c.b16 %v955, %v954
        %v1144 = vpack.c.b16 %v957, %v956
        %v1145 = vpack.c.b16 %v959, %v958
        %v1146 = vpack.c.b16 %v961, %v960
        %v1147 = vpack.c.b16 %v963, %v962
        %v1148 = vpack.c.b16 %v965, %v964
        %v1149 = vpack.c.b16 %v967, %v966
        %v1150 = vpack.c.b16 %v969, %v968
        %v1151 = vpack.c.b16 %v971, %v970
        %v1152 = vpack.c.b16 %v973, %v972
        %v1153 = vpack.c.b16 %v975, %v974
        %v1154 = vpack.c.b16 %v977, %v976
        %v1155 = vpack.c.b16 %v979, %v978
        %v1156 = vpack.c.b16 %v981, %v980
        %v1157 = vpack.c.b16 %v983, %v982
        %v1158 = vpack.c.b16 %v985, %v984
        %v1159 = vpack.c.b16 %v987, %v986
        %v1160 = vpack.c.b16 %v989, %v988
        %v1161 = vpack.c.b16 %v991, %v990
        %v1162 = vpack.c.b16 %v993, %v992
        %v1163 = vpack.c.b16 %v995, %v994
        %v1164 = vpack.c.b16 %v997, %v996
        %v1165 = vpack.c.b16 %v999, %v998
        %v1166 = vpack.c.b16 %v1001, %v1000
        %v1167 = vpack.c.b16 %v1003, %v1002
        %v1168 = vpack.c.b16 %v1005, %v1004
        %v1169 = vpack.c.b16 %v1007, %v1006
        %v1170 = vpack.c.b16 %v1009, %v1008
        %v1171 = vpack.c.b16 %v1011, %v1010
        %v1172 = vpack.c.b16 %v1013, %v1012
        %v1173 = vpack.c.b16 %v1015, %v1014
        %v1174 = vpack.c.b16 %v1017, %v1016
        %v1175 = vpack.c.b16 %v1019, %v1018
        %v1176 = vpack.c.b16 %v1021, %v1020
        %v1177 = vpack.c.b16 %v1023, %v1022
        %v1178 = vpack.c.b16 %v1025, %v1024
        %v1179 = vpack.c.b16 %v1027, %v1026
        %v1180 = vpack.c.b16 %v1029, %v1028
        %v1181 = vpack.c.b16 %v1031, %v1030
        %v1182 = vpack.c.b16 %v1033, %v1032
        %v1183 = vpack.c.b16 %v1035, %v1034
        %v1184 = vpack.c.b16 %v1037, %v1036
        %v1185 = vpack.c.b16 %v1039, %v1038
        %v1186 = vpack.c.b16 %v1041, %v1040
        %v1187 = vpack.c.b16 %v1043, %v1042
        %v1188 = vpack.c.b16 %v1045, %v1044
        %v1189 = vpack.c.b16 %v1047, %v1046
        %v1190 = vpack.c.b16 %v1049, %v1048
        %v1191 = vpack.c.b16 %v1051, %v1050
        %v1192 = vpack.c.b16 %v1053, %v1052
        %v1193 = vpack.c.b16 %v1055, %v1054
        %v1194 = vpack.c.b16 %v1057, %v1056
        %v1195 = vpack.c.b16 %v1059, %v1058
        %v1196 = vpack.c.b16 %v1061, %v1060
        %v1197 = vpack.c.b16 %v1063, %v1062
        %v1198 = vpack.c.b16 %v1065, %v1064
        %v1199 = vpack.c.b16 %v1067, %v1066
        %v1200 = vpack.c.b16 %v1069, %v1068
        %v1201 = vpack.c.b16 %v1071, %v1070
        %v1202 = vpack.c.b16 %v1073, %v1072
        %v1203 = vpack.c.b16 %v1075, %v1074
        %1332 = vmatprep.subr.bf16.mxu0 0
        %1333 = vmatpush1.bf16.msra.mxu0 %v1076
        %1334 = vmatprep.subr.bf16.mxu0 0
        %1335 = vmatpush1.bf16.msra.mxu0 %v1077
        %1336 = vmatprep.subr.bf16.mxu0 0
        %1337 = vmatpush1.bf16.msra.mxu0 %v1078
        %1338 = vmatprep.subr.bf16.mxu0 0
        %1339 = vmatpush1.bf16.msra.mxu0 %v1079
        %1340 = vmatprep.subr.bf16.mxu0 0
        %1341 = vmatpush1.bf16.msra.mxu0 %v1080
        %1342 = vmatprep.subr.bf16.mxu0 0
        %1343 = vmatpush1.bf16.msra.mxu0 %v1081
        %1344 = vmatprep.subr.bf16.mxu0 0
        %1345 = vmatpush1.bf16.msra.mxu0 %v1082
        %1346 = vmatprep.subr.bf16.mxu0 0
        %1347 = vmatpush1.bf16.msra.mxu0 %v1083
        %1348 = vmatprep.subr.bf16.mxu0 0
        %1349 = vmatpush1.bf16.msra.mxu0 %v1084
        %1350 = vmatprep.subr.bf16.mxu0 0
        %1351 = vmatpush1.bf16.msra.mxu0 %v1085
        %1352 = vmatprep.subr.bf16.mxu0 0
        %1353 = vmatpush1.bf16.msra.mxu0 %v1086
        %1354 = vmatprep.subr.bf16.mxu0 0
        %1355 = vmatpush1.bf16.msra.mxu0 %v1087
        %1356 = vmatprep.subr.bf16.mxu0 0
        %1357 = vmatpush1.bf16.msra.mxu0 %v1088
        %1358 = vmatprep.subr.bf16.mxu0 0
        %1359 = vmatpush1.bf16.msra.mxu0 %v1089
        %1360 = vmatprep.subr.bf16.mxu0 0
        %1361 = vmatpush1.bf16.msra.mxu0 %v1090
        %1362 = vmatprep.subr.bf16.mxu0 0
        %1363 = vmatpush1.bf16.msra.mxu0 %v1091
        %1364 = vmatprep.mubr.bf16.mxu0 %v293
        %1365 = vmatmul.mubr.bf16.gmra.mrb[0].mxu0 %v292
        %v1366 = vpop.f32.mrb[0].mxu0
        %v1367 = vadd.f32 0.0, %v1366
        %v1368 = vpop.f32.mrb[0].mxu0
        %v1369 = vpop.f32.mrb[0].mxu0
        %v1370 = vpop.f32.mrb[0].mxu0
        %1371 = vdwg.mxu0
        %1372 = vmatprep.subr.bf16.mxu0 0
        %1373 = vmatpush1.bf16.msra.mxu0 %v1092
        %1374 = vmatprep.subr.bf16.mxu0 0
        %1375 = vmatpush1.bf16.msra.mxu0 %v1093
        %1376 = vmatprep.subr.bf16.mxu0 0
        %1377 = vmatpush1.bf16.msra.mxu0 %v1094
        %1378 = vmatprep.subr.bf16.mxu0 0
        %1379 = vmatpush1.bf16.msra.mxu0 %v1095
        %1380 = vmatprep.subr.bf16.mxu0 0
        %1381 = vmatpush1.bf16.msra.mxu0 %v1096
        %1382 = vmatprep.subr.bf16.mxu0 0
        %1383 = vmatpush1.bf16.msra.mxu0 %v1097
        %1384 = vmatprep.subr.bf16.mxu0 0
        %1385 = vmatpush1.bf16.msra.mxu0 %v1098
        %1386 = vmatprep.subr.bf16.mxu0 0
        %1387 = vmatpush1.bf16.msra.mxu0 %v1099
        %1388 = vmatprep.subr.bf16.mxu0 0
        %1389 = vmatpush1.bf16.msra.mxu0 %v1100
        %1390 = vmatprep.subr.bf16.mxu0 0
        %1391 = vmatpush1.bf16.msra.mxu0 %v1101
        %1392 = vmatprep.subr.bf16.mxu0 0
        %1393 = vmatpush1.bf16.msra.mxu0 %v1102
        %1394 = vmatprep.subr.bf16.mxu0 0
        %1395 = vmatpush1.bf16.msra.mxu0 %v1103
        %1396 = vmatprep.subr.bf16.mxu0 0
        %1397 = vmatpush1.bf16.msra.mxu0 %v1104
        %1398 = vmatprep.subr.bf16.mxu0 0
        %1399 = vmatpush1.bf16.msra.mxu0 %v1105
        %1400 = vmatprep.subr.bf16.mxu0 0
        %1401 = vmatpush1.bf16.msra.mxu0 %v1106
        %1402 = vmatprep.subr.bf16.mxu0 0
        %1403 = vmatpush1.bf16.msra.mxu0 %v1107
        %1404 = vmatprep.mubr.bf16.mxu0 %v295
        %1405 = vmatmul.mubr.bf16.gmra.mrb[0].mxu0 %v294
        %v1406 = vpop.f32.mrb[0].mxu0
        %v1407 = vadd.f32 %v1367, %v1406
        %v1408 = vpop.f32.mrb[0].mxu0
        %v1409 = vpop.f32.mrb[0].mxu0
        %v1410 = vpop.f32.mrb[0].mxu0
        %1411 = vdwg.mxu0
        %1412 = vmatprep.subr.bf16.mxu0 0
        %1413 = vmatpush1.bf16.msra.mxu0 %v1108
        %1414 = vmatprep.subr.bf16.mxu0 0
        %1415 = vmatpush1.bf16.msra.mxu0 %v1109
        %1416 = vmatprep.subr.bf16.mxu0 0
        %1417 = vmatpush1.bf16.msra.mxu0 %v1110
        %1418 = vmatprep.subr.bf16.mxu0 0
        %1419 = vmatpush1.bf16.msra.mxu0 %v1111
        %1420 = vmatprep.subr.bf16.mxu0 0
        %1421 = vmatpush1.bf16.msra.mxu0 %v1112
        %1422 = vmatprep.subr.bf16.mxu0 0
        %1423 = vmatpush1.bf16.msra.mxu0 %v1113
        %1424 = vmatprep.subr.bf16.mxu0 0
        %1425 = vmatpush1.bf16.msra.mxu0 %v1114
        %1426 = vmatprep.subr.bf16.mxu0 0
        %1427 = vmatpush1.bf16.msra.mxu0 %v1115
        %1428 = vmatprep.subr.bf16.mxu0 0
        %1429 = vmatpush1.bf16.msra.mxu0 %v1116
        %1430 = vmatprep.subr.bf16.mxu0 0
        %1431 = vmatpush1.bf16.msra.mxu0 %v1117
        %1432 = vmatprep.subr.bf16.mxu0 0
        %1433 = vmatpush1.bf16.msra.mxu0 %v1118
        %1434 = vmatprep.subr.bf16.mxu0 0
        %1435 = vmatpush1.bf16.msra.mxu0 %v1119
        %1436 = vmatprep.subr.bf16.mxu0 0
        %1437 = vmatpush1.bf16.msra.mxu0 %v1120
        %1438 = vmatprep.subr.bf16.mxu0 0
        %1439 = vmatpush1.bf16.msra.mxu0 %v1121
        %1440 = vmatprep.subr.bf16.mxu0 0
        %1441 = vmatpush1.bf16.msra.mxu0 %v1122
        %1442 = vmatprep.subr.bf16.mxu0 0
        %1443 = vmatpush1.bf16.msra.mxu0 %v1123
        %1444 = vmatprep.mubr.bf16.mxu0 %v297
        %1445 = vmatmul.mubr.bf16.gmra.mrb[0].mxu0 %v296
        %v1446 = vpop.f32.mrb[0].mxu0
        %v1447 = vadd.f32 %v1407, %v1446
        %v1448 = vpop.f32.mrb[0].mxu0
        %v1449 = vpop.f32.mrb[0].mxu0
        %v1450 = vpop.f32.mrb[0].mxu0
        %1451 = vdwg.mxu0
        %1452 = vmatprep.subr.bf16.mxu0 0
        %1453 = vmatpush1.bf16.msra.mxu0 %v1124
        %1454 = vmatprep.subr.bf16.mxu0 0
        %1455 = vmatpush1.bf16.msra.mxu0 %v1125
        %1456 = vmatprep.subr.bf16.mxu0 0
        %1457 = vmatpush1.bf16.msra.mxu0 %v1126
        %1458 = vmatprep.subr.bf16.mxu0 0
        %1459 = vmatpush1.bf16.msra.mxu0 %v1127
        %1460 = vmatprep.subr.bf16.mxu0 0
        %1461 = vmatpush1.bf16.msra.mxu0 %v1128
        %1462 = vmatprep.subr.bf16.mxu0 0
        %1463 = vmatpush1.bf16.msra.mxu0 %v1129
        %1464 = vmatprep.subr.bf16.mxu0 0
        %1465 = vmatpush1.bf16.msra.mxu0 %v1130
        %1466 = vmatprep.subr.bf16.mxu0 0
        %1467 = vmatpush1.bf16.msra.mxu0 %v1131
        %1468 = vmatprep.subr.bf16.mxu0 0
        %1469 = vmatpush1.bf16.msra.mxu0 %v1132
        %1470 = vmatprep.subr.bf16.mxu0 0
        %1471 = vmatpush1.bf16.msra.mxu0 %v1133
        %1472 = vmatprep.subr.bf16.mxu0 0
        %1473 = vmatpush1.bf16.msra.mxu0 %v1134
        %1474 = vmatprep.subr.bf16.mxu0 0
        %1475 = vmatpush1.bf16.msra.mxu0 %v1135
        %1476 = vmatprep.subr.bf16.mxu0 0
        %1477 = vmatpush1.bf16.msra.mxu0 %v1136
        %1478 = vmatprep.subr.bf16.mxu0 0
        %1479 = vmatpush1.bf16.msra.mxu0 %v1137
        %1480 = vmatprep.subr.bf16.mxu0 0
        %1481 = vmatpush1.bf16.msra.mxu0 %v1138
        %1482 = vmatprep.subr.bf16.mxu0 0
        %1483 = vmatpush1.bf16.msra.mxu0 %v1139
        %1484 = vmatprep.mubr.bf16.mxu0 %v299
        %1485 = vmatmul.mubr.bf16.gmra.mrb[0].mxu0 %v298
        %v1486 = vpop.f32.mrb[0].mxu0
        %v1487 = vadd.f32 %v1447, %v1486
        %v1488 = vpop.f32.mrb[0].mxu0
        %v1489 = vpop.f32.mrb[0].mxu0
        %v1490 = vpop.f32.mrb[0].mxu0
        %1491 = vdwg.mxu0
        %1492 = vmatprep.subr.bf16.mxu0 0
        %1493 = vmatpush1.bf16.msra.mxu0 %v1140
        %1494 = vmatprep.subr.bf16.mxu0 0
        %1495 = vmatpush1.bf16.msra.mxu0 %v1141
        %1496 = vmatprep.subr.bf16.mxu0 0
        %1497 = vmatpush1.bf16.msra.mxu0 %v1142
        %1498 = vmatprep.subr.bf16.mxu0 0
        %1499 = vmatpush1.bf16.msra.mxu0 %v1143
        %1500 = vmatprep.subr.bf16.mxu0 0
        %1501 = vmatpush1.bf16.msra.mxu0 %v1144
        %1502 = vmatprep.subr.bf16.mxu0 0
        %1503 = vmatpush1.bf16.msra.mxu0 %v1145
        %1504 = vmatprep.subr.bf16.mxu0 0
        %1505 = vmatpush1.bf16.msra.mxu0 %v1146
        %1506 = vmatprep.subr.bf16.mxu0 0
        %1507 = vmatpush1.bf16.msra.mxu0 %v1147
        %1508 = vmatprep.subr.bf16.mxu0 0
        %1509 = vmatpush1.bf16.msra.mxu0 %v1148
        %1510 = vmatprep.subr.bf16.mxu0 0
        %1511 = vmatpush1.bf16.msra.mxu0 %v1149
        %1512 = vmatprep.subr.bf16.mxu0 0
        %1513 = vmatpush1.bf16.msra.mxu0 %v1150
        %1514 = vmatprep.subr.bf16.mxu0 0
        %1515 = vmatpush1.bf16.msra.mxu0 %v1151
        %1516 = vmatprep.subr.bf16.mxu0 0
        %1517 = vmatpush1.bf16.msra.mxu0 %v1152
        %1518 = vmatprep.subr.bf16.mxu0 0
        %1519 = vmatpush1.bf16.msra.mxu0 %v1153
        %1520 = vmatprep.subr.bf16.mxu0 0
        %1521 = vmatpush1.bf16.msra.mxu0 %v1154
        %1522 = vmatprep.subr.bf16.mxu0 0
        %1523 = vmatpush1.bf16.msra.mxu0 %v1155
        %1524 = vmatprep.mubr.bf16.mxu0 %v301
        %1525 = vmatmul.mubr.bf16.gmra.mrb[0].mxu0 %v300
        %v1526 = vpop.f32.mrb[0].mxu0
        %v1527 = vadd.f32 %v1487, %v1526
        %v1528 = vpop.f32.mrb[0].mxu0
        %v1529 = vpop.f32.mrb[0].mxu0
        %v1530 = vpop.f32.mrb[0].mxu0
        %1531 = vdwg.mxu0
        %1532 = vmatprep.subr.bf16.mxu0 0
        %1533 = vmatpush1.bf16.msra.mxu0 %v1156
        %1534 = vmatprep.subr.bf16.mxu0 0
        %1535 = vmatpush1.bf16.msra.mxu0 %v1157
        %1536 = vmatprep.subr.bf16.mxu0 0
        %1537 = vmatpush1.bf16.msra.mxu0 %v1158
        %1538 = vmatprep.subr.bf16.mxu0 0
        %1539 = vmatpush1.bf16.msra.mxu0 %v1159
        %1540 = vmatprep.subr.bf16.mxu0 0
        %1541 = vmatpush1.bf16.msra.mxu0 %v1160
        %1542 = vmatprep.subr.bf16.mxu0 0
        %1543 = vmatpush1.bf16.msra.mxu0 %v1161
        %1544 = vmatprep.subr.bf16.mxu0 0
        %1545 = vmatpush1.bf16.msra.mxu0 %v1162
        %1546 = vmatprep.subr.bf16.mxu0 0
        %1547 = vmatpush1.bf16.msra.mxu0 %v1163
        %1548 = vmatprep.subr.bf16.mxu0 0
        %1549 = vmatpush1.bf16.msra.mxu0 %v1164
        %1550 = vmatprep.subr.bf16.mxu0 0
        %1551 = vmatpush1.bf16.msra.mxu0 %v1165
        %1552 = vmatprep.subr.bf16.mxu0 0
        %1553 = vmatpush1.bf16.msra.mxu0 %v1166
        %1554 = vmatprep.subr.bf16.mxu0 0
        %1555 = vmatpush1.bf16.msra.mxu0 %v1167
        %1556 = vmatprep.subr.bf16.mxu0 0
        %1557 = vmatpush1.bf16.msra.mxu0 %v1168
        %1558 = vmatprep.subr.bf16.mxu0 0
        %1559 = vmatpush1.bf16.msra.mxu0 %v1169
        %1560 = vmatprep.subr.bf16.mxu0 0
        %1561 = vmatpush1.bf16.msra.mxu0 %v1170
        %1562 = vmatprep.subr.bf16.mxu0 0
        %1563 = vmatpush1.bf16.msra.mxu0 %v1171
        %1564 = vmatprep.mubr.bf16.mxu0 %v303
        %1565 = vmatmul.mubr.bf16.gmra.mrb[0].mxu0 %v302
        %v1566 = vpop.f32.mrb[0].mxu0
        %v1567 = vadd.f32 %v1527, %v1566
        %v1568 = vpop.f32.mrb[0].mxu0
        %v1569 = vpop.f32.mrb[0].mxu0
        %v1570 = vpop.f32.mrb[0].mxu0
        %1571 = vdwg.mxu0
        %1572 = vmatprep.subr.bf16.mxu0 0
        %1573 = vmatpush1.bf16.msra.mxu0 %v1172
        %1574 = vmatprep.subr.bf16.mxu0 0
        %1575 = vmatpush1.bf16.msra.mxu0 %v1173
        %1576 = vmatprep.subr.bf16.mxu0 0
        %1577 = vmatpush1.bf16.msra.mxu0 %v1174
        %1578 = vmatprep.subr.bf16.mxu0 0
        %1579 = vmatpush1.bf16.msra.mxu0 %v1175
        %1580 = vmatprep.subr.bf16.mxu0 0
        %1581 = vmatpush1.bf16.msra.mxu0 %v1176
        %1582 = vmatprep.subr.bf16.mxu0 0
        %1583 = vmatpush1.bf16.msra.mxu0 %v1177
        %1584 = vmatprep.subr.bf16.mxu0 0
        %1585 = vmatpush1.bf16.msra.mxu0 %v1178
        %1586 = vmatprep.subr.bf16.mxu0 0
        %1587 = vmatpush1.bf16.msra.mxu0 %v1179
        %1588 = vmatprep.subr.bf16.mxu0 0
        %1589 = vmatpush1.bf16.msra.mxu0 %v1180
        %1590 = vmatprep.subr.bf16.mxu0 0
        %1591 = vmatpush1.bf16.msra.mxu0 %v1181
        %1592 = vmatprep.subr.bf16.mxu0 0
        %1593 = vmatpush1.bf16.msra.mxu0 %v1182
        %1594 = vmatprep.subr.bf16.mxu0 0
        %1595 = vmatpush1.bf16.msra.mxu0 %v1183
        %1596 = vmatprep.subr.bf16.mxu0 0
        %1597 = vmatpush1.bf16.msra.mxu0 %v1184
        %1598 = vmatprep.subr.bf16.mxu0 0
        %1599 = vmatpush1.bf16.msra.mxu0 %v1185
        %1600 = vmatprep.subr.bf16.mxu0 0
        %1601 = vmatpush1.bf16.msra.mxu0 %v1186
        %1602 = vmatprep.subr.bf16.mxu0 0
        %1603 = vmatpush1.bf16.msra.mxu0 %v1187
        %1604 = vmatprep.mubr.bf16.mxu0 %v305
        %1605 = vmatmul.mubr.bf16.gmra.mrb[0].mxu0 %v304
        %v1606 = vpop.f32.mrb[0].mxu0
        %v1607 = vadd.f32 %v1567, %v1606
        %v1608 = vpop.f32.mrb[0].mxu0
        %v1609 = vpop.f32.mrb[0].mxu0
        %v1610 = vpop.f32.mrb[0].mxu0
        %1611 = vdwg.mxu0
        %1612 = vmatprep.subr.bf16.mxu0 0
        %1613 = vmatpush1.bf16.msra.mxu0 %v1188
        %1614 = vmatprep.subr.bf16.mxu0 0
        %1615 = vmatpush1.bf16.msra.mxu0 %v1189
        %1616 = vmatprep.subr.bf16.mxu0 0
        %1617 = vmatpush1.bf16.msra.mxu0 %v1190
        %1618 = vmatprep.subr.bf16.mxu0 0
        %1619 = vmatpush1.bf16.msra.mxu0 %v1191
        %1620 = vmatprep.subr.bf16.mxu0 0
        %1621 = vmatpush1.bf16.msra.mxu0 %v1192
        %1622 = vmatprep.subr.bf16.mxu0 0
        %1623 = vmatpush1.bf16.msra.mxu0 %v1193
        %1624 = vmatprep.subr.bf16.mxu0 0
        %1625 = vmatpush1.bf16.msra.mxu0 %v1194
        %1626 = vmatprep.subr.bf16.mxu0 0
        %1627 = vmatpush1.bf16.msra.mxu0 %v1195
        %1628 = vmatprep.subr.bf16.mxu0 0
        %1629 = vmatpush1.bf16.msra.mxu0 %v1196
        %1630 = vmatprep.subr.bf16.mxu0 0
        %1631 = vmatpush1.bf16.msra.mxu0 %v1197
        %1632 = vmatprep.subr.bf16.mxu0 0
        %1633 = vmatpush1.bf16.msra.mxu0 %v1198
        %1634 = vmatprep.subr.bf16.mxu0 0
        %1635 = vmatpush1.bf16.msra.mxu0 %v1199
        %1636 = vmatprep.subr.bf16.mxu0 0
        %1637 = vmatpush1.bf16.msra.mxu0 %v1200
        %1638 = vmatprep.subr.bf16.mxu0 0
        %1639 = vmatpush1.bf16.msra.mxu0 %v1201
        %1640 = vmatprep.subr.bf16.mxu0 0
        %1641 = vmatpush1.bf16.msra.mxu0 %v1202
        %1642 = vmatprep.subr.bf16.mxu0 0
        %1643 = vmatpush1.bf16.msra.mxu0 %v1203
        %1644 = vmatprep.mubr.bf16.mxu0 %v307
        %1645 = vmatmul.mubr.bf16.gmra.mrb[0].mxu0 %v306
        %v1646 = vpop.f32.mrb[0].mxu0
        %v1647 = vadd.f32 %v1607, %v1646
        %v1648 = vpop.f32.mrb[0].mxu0
        %v1649 = vpop.f32.mrb[0].mxu0
        %v1650 = vpop.f32.mrb[0].mxu0
        %1651 = vdwg.mxu0
        %v1652 = vadd.f32 %v275, %v1647
        %1653 = vst [vmem:[#allocation2] sm:$0xff] %v1652
        %p1654 = scmp.eq.s32.totalorder %s28, 2
        // Predicated region
        $region49: #{tpu_custom_call.1} parent=31 // pred_check
          %p1655 = pneg %p1654
        $region50: #{tpu_custom_call.1} parent=31 // pred_check_branch
          %1657 = sbr.rel (%p1655) target = $region52
        $region51: #{tpu_custom_call.1} parent=31 // pred_region
          %v1658 = vld [vmem:[#allocation2] sm:$0xff]
          %v1659 = vld [vmem:[#allocation8] sm:$0x1]
          %v1661 = vlaneseq
          %v1662 = vshrl.u32 %v1661, 7
          %v1663 = vsub.s32 0, %v1662
          %v1664 = vrot.slane %v1659, %v1663
          %v1666 = vadd.f32 %v1658, %v1664
          %1667 = vst [vmem:[#allocation9] sm:$0xff] %v1666
        $region52: #{tpu_custom_call.1} parent=31 // pred_fallthru
          _
        // Predicated region
        $region53: #{tpu_custom_call.1} parent=31 // pred_check
          %p1668 = pneg %p142
        $region54: #{tpu_custom_call.1} parent=31 // pred_check_branch
          %1670 = sbr.rel (%p1668) target = $region56
        $region55: #{tpu_custom_call.1} parent=31 // pred_region
          %s1672 = ssub.s32 128, 128
          %1673 = vsyncadd [#allocation5], %s1672
          %s1674 = sadd.s32 %s27, %s26
          %s1675 = smul.addr %s1674, 128
          %s1676 = scalar_lea.hbm %s3, %s1675
          %s1678 = sshll.u32 [#allocation9], 4
          %s1679 = int_to_ptr.vmem [resolvable:$true] %s1678
          %1681 = dma.vmem_to_hbm [thread:$0]  %s1679, 128, %s1676, [#allocation5]
        $region56: #{tpu_custom_call.1} parent=31 // pred_fallthru
          _
        // Predicated region
        $region57: #{tpu_custom_call.1} parent=31 // pred_check
          %p1682 = pneg %p142
        $region58: #{tpu_custom_call.1} parent=31 // pred_check_branch
          %1684 = sbr.rel (%p1682) target = $region60
        $region59: #{tpu_custom_call.1} parent=31 // pred_region
          %1685 = dma.done [#allocation5], 128
        $region60: #{tpu_custom_call.1} parent=31 // pred_fallthru
          _
      $region32: #{tpu_custom_call.1} parent=5 // pred_fallthru
        _
      %p1686 = scmp.le.s32.totalorder 2, %s16
      // Predicated region
      $region61: #{tpu_custom_call.1} parent=5 // pred_check
        %p1687 = pneg %p1686
      $region62: #{tpu_custom_call.1} parent=5 // pred_check_branch
        %1689 = sbr.rel (%p1687) target = $region64
      $region63: #{tpu_custom_call.1} parent=5 // pred_region
        %s1690 = ssub.s32 %s16, 2
      $region64: #{tpu_custom_call.1} parent=5 // pred_fallthru
        _
    $region6: #{tpu_custom_call.1} parent=1 // loop_footer
      %s20 = sadd.s32 1, %s16
    $region7: #{tpu_custom_call.1} parent=1 // loop_footer_branch
      %15 = sbr.rel target = $region3
    $region8: #{tpu_custom_call.1} parent=1 // loop_exit
      _
    %1691 = vsyncpa [#allocation4], 1
    %s1692 = scalar_lea.sflag [#allocation4], 1
    %1693 = vsyncpa %s1692, 1
    %1694 = vsyncpa [#allocation7], 1
    %s1695 = scalar_lea.sflag [#allocation7], 1
    %1696 = vsyncpa %s1695, 1
    %1697 = vsyncpa [#allocation5], 1
    %s1698 = scalar_lea.sflag [#allocation5], 1
    %1699 = vsyncpa %s1698, 1

</llo_original>
